<compile_context>
chip_gen: v7x
topology: tpu7x:2x2x1
jax: 0.10.0
libtpu: 0.0.40
codegen_flags: <defaults>
</compile_context>

<pallas_src>
import math
from functools import partial

import jax
import jax.numpy as jnp
from jax import lax
from jax.experimental import pallas as pl
from jax.experimental.pallas import tpu as pltpu

NEG_INF = -1e9
LN_EPS = 1e-5
VMEM_LIMIT = 48 * 1024 * 1024   # leaves headroom inside v7x's 64 MiB VMEM


def _round_up(x, m):
    return (x + m - 1) // m * m


def _tile(dim, pref, align):
    """Tile size <= pref (aligned to `align` when dim is small) and padded extent."""
    t = min(pref, _round_up(dim, align))
    return t, _round_up(dim, t)


# ----------------------------- tiled linear kernel -----------------------------

def _linear_kernel(x_ref, w_ref, b_ref, o_ref, acc_ref, *, relu):
    @pl.when(pl.program_id(2) == 0)
    def _():
        acc_ref[...] = jnp.zeros_like(acc_ref)

    acc_ref[...] += jnp.dot(x_ref[...], w_ref[...],
                            preferred_element_type=jnp.float32)

    @pl.when(pl.program_id(2) == pl.num_programs(2) - 1)
    def _():
        y = acc_ref[...] + b_ref[...]          # bias in f32
        if relu:
            y = jnp.maximum(y, 0.0)
        o_ref[...] = y.astype(o_ref.dtype)


def linear(x2d, w_kn, b_n, *, relu=False, out_dtype=jnp.float32,
           tm=256, tn=256, tk=512):
    """y = x @ w + b (optional ReLU). x:(M,K), w:(K,N) bf16 pre-transposed, b:(N,) f32."""
    M, K = x2d.shape
    K2, N = w_kn.shape
    assert K == K2

    tm, Mp = _tile(M, tm, 8)
    tn, Np = _tile(N, tn, 128)     # lane-dense output tiles
    tk, Kp = _tile(K, tk, 128)

    x = x2d.astype(jnp.bfloat16)
    w = w_kn.astype(jnp.bfloat16)
    b = b_n.astype(jnp.float32).reshape(1, N)
    if (Mp, Kp) != (M, K):
        x = jnp.pad(x, ((0, Mp - M), (0, Kp - K)))
    if (Kp, Np) != (K, N):
        w = jnp.pad(w, ((0, Kp - K), (0, Np - N)))
    if Np != N:
        b = jnp.pad(b, ((0, 0), (0, Np - N)))

    out = pl.pallas_call(
        partial(_linear_kernel, relu=relu),
        out_shape=jax.ShapeDtypeStruct((Mp, Np), out_dtype),
        grid_spec=pltpu.PrefetchScalarGridSpec(
            num_scalar_prefetch=0,
            grid=(Mp // tm, Np // tn, Kp // tk),
            in_specs=[
                pl.BlockSpec((tm, tk), lambda i, j, k: (i, k)),
                pl.BlockSpec((tk, tn), lambda i, j, k: (k, j)),
                pl.BlockSpec((1, tn), lambda i, j, k: (0, j)),
            ],
            out_specs=pl.BlockSpec((tm, tn), lambda i, j, k: (i, j)),
            scratch_shapes=[pltpu.VMEM((tm, tn), jnp.float32)],
        ),
        compiler_params=pltpu.CompilerParams(
            dimension_semantics=("parallel", "parallel", "arbitrary"),
            vmem_limit_bytes=VMEM_LIMIT),
    )(x, w, b)
    if (Mp, Np) != (M, N):
        out = out[:M, :N]
    return out


# ------------------------------ LayerNorm kernels ------------------------------

def _add_ln_kernel(x_ref, y_ref, g_ref, b_ref, o_ref):
    x = x_ref[...].astype(jnp.float32) + y_ref[...].astype(jnp.float32)
    mu = jnp.mean(x, axis=-1, keepdims=True)
    var = jnp.mean(jnp.square(x - mu), axis=-1, keepdims=True)
    xn = (x - mu) * lax.rsqrt(var + LN_EPS)
    o_ref[...] = (xn * g_ref[...] + b_ref[...]).astype(o_ref.dtype)


def _ln_kernel(x_ref, g_ref, b_ref, o_ref):
    x = x_ref[...].astype(jnp.float32)
    mu = jnp.mean(x, axis=-1, keepdims=True)
    var = jnp.mean(jnp.square(x - mu), axis=-1, keepdims=True)
    xn = (x - mu) * lax.rsqrt(var + LN_EPS)
    o_ref[...] = (xn * g_ref[...] + b_ref[...]).astype(o_ref.dtype)


def _run_layernorm(kernel, row_inputs, gamma, beta, M, D, out_dtype, tr=512):
    tr, Mp = _tile(M, tr, 8)
    padded = [jnp.pad(a, ((0, Mp - M), (0, 0))) if Mp != M else a for a in row_inputs]
    g = gamma.reshape(1, D).astype(jnp.float32)
    b = beta.reshape(1, D).astype(jnp.float32)
    row_spec = pl.BlockSpec((tr, D), lambda i: (i, 0))
    vec_spec = pl.BlockSpec((1, D), lambda i: (0, 0))
    out = pl.pallas_call(
        kernel,
        out_shape=jax.ShapeDtypeStruct((Mp, D), out_dtype),
        grid_spec=pltpu.PrefetchScalarGridSpec(
            num_scalar_prefetch=0,
            grid=(Mp // tr,),
            in_specs=[row_spec] * len(padded) + [vec_spec, vec_spec],
            out_specs=row_spec,
        ),
        compiler_params=pltpu.CompilerParams(
            dimension_semantics=("parallel",),
            vmem_limit_bytes=VMEM_LIMIT),
    )(*padded, g, b)
    return out[:M] if Mp != M else out


def add_layernorm(x3d, y3d, gamma, beta):
    B, T, D = x3d.shape
    out = _run_layernorm(_add_ln_kernel,
                         [x3d.reshape(B * T, D), y3d.reshape(B * T, D)],
                         gamma, beta, B * T, D, x3d.dtype)
    return out.reshape(B, T, D)


def layernorm(x3d, gamma, beta):
    B, T, D = x3d.shape
    out = _run_layernorm(_ln_kernel, [x3d.reshape(B * T, D)],
                         gamma, beta, B * T, D, x3d.dtype)
    return out.reshape(B, T, D)


# ------------------------------ attention kernel -------------------------------

def _attention_kernel(*refs, scale, has_mask):
    if has_mask:
        q_ref, k_ref, v_ref, m_ref, o_ref = refs
    else:
        q_ref, k_ref, v_ref, o_ref = refs
    q = q_ref[0, 0] * scale                         # fold 1/sqrt(Dh) into q (bf16)
    k = k_ref[0, 0]
    v = v_ref[0, 0]
    # f32 scores, contracting on the head dim (no k.T / XLU transpose)
    s = lax.dot_general(q, k, (((1,), (1,)), ((), ())),
                        preferred_element_type=jnp.float32)
    if has_mask:
        s = s + m_ref[0]                            # additive f32 mask, f32 path
    m = jnp.max(s, axis=-1, keepdims=True)
    p = jnp.exp(s - m)
    denom = jnp.sum(p, axis=-1, keepdims=True)
    p = p * pl.reciprocal(denom, approx=True)
    o = jnp.dot(p.astype(v.dtype), v, preferred_element_type=jnp.float32)
    o_ref[0, 0] = o.astype(o_ref.dtype)


def scaled_dot_attention(q, k, v, add_mask=None):
    """q:(B,H,Tq,Dh), k/v:(B,H,Tk,Dh) bf16; add_mask None or f32 (B,Mr,Tk), Mr in {1,Tq}."""
    B, H, Tq, Dh = q.shape
    Tk = k.shape[2]
    scale = 1.0 / math.sqrt(Dh)
    has_mask = add_mask is not None

    in_specs = [
        pl.BlockSpec((1, 1, Tq, Dh), lambda b, h: (b, h, 0, 0)),
        pl.BlockSpec((1, 1, Tk, Dh), lambda b, h: (b, h, 0, 0)),
        pl.BlockSpec((1, 1, Tk, Dh), lambda b, h: (b, h, 0, 0)),
    ]
    args = [q, k, v]
    if has_mask:
        Mr = add_mask.shape[1]
        # same batch block for every head -> fetched once per batch, no H× broadcast
        in_specs.append(pl.BlockSpec((1, Mr, Tk), lambda b, h: (b, 0, 0)))
        args.append(add_mask.astype(jnp.float32))

    return pl.pallas_call(
        partial(_attention_kernel, scale=scale, has_mask=has_mask),
        out_shape=jax.ShapeDtypeStruct((B, H, Tq, Dh), q.dtype),
        grid_spec=pltpu.PrefetchScalarGridSpec(
            num_scalar_prefetch=0,
            grid=(B, H),
            in_specs=in_specs,
            out_specs=pl.BlockSpec((1, 1, Tq, Dh), lambda b, h: (b, h, 0, 0)),
        ),
        compiler_params=pltpu.CompilerParams(
            dimension_semantics=("parallel", "parallel"),
            vmem_limit_bytes=VMEM_LIMIT),
    )(*args)


# ----------------------------- transformer blocks ------------------------------

def multi_head_attention(xq, xkv, p, add_mask, n_head, *, is_self):
    B, Tq, D = xq.shape
    Tk = xkv.shape[1]
    Dh = D // n_head

    if is_self:
        # fused Q/K/V projection: one matmul -> (B*Tq, 3D)
        qkv = linear(xq.reshape(B * Tq, D), p["wqkv"], p["bqkv"],
                     out_dtype=jnp.bfloat16)
        qkv = qkv.reshape(B, Tq, 3, n_head, Dh).transpose(2, 0, 3, 1, 4)
        q, k, v = qkv[0], qkv[1], qkv[2]                       # (B, H, T, Dh)
    else:
        q = linear(xq.reshape(B * Tq, D), p["wq"], p["bq"],
                   out_dtype=jnp.bfloat16)
        q = q.reshape(B, Tq, n_head, Dh).transpose(0, 2, 1, 3)
        # fused K/V projection of the memory
        kv = linear(xkv.reshape(B * Tk, D), p["wkv"], p["bkv"],
                    out_dtype=jnp.bfloat16)
        kv = kv.reshape(B, Tk, 2, n_head, Dh).transpose(2, 0, 3, 1, 4)
        k, v = kv[0], kv[1]

    o = scaled_dot_attention(q, k, v, add_mask)                # (B, H, Tq, Dh) bf16
    o = o.transpose(0, 2, 1, 3).reshape(B * Tq, D)
    return linear(o, p["wo"], p["bo"]).reshape(B, Tq, D)


def feed_forward(x3d, p):
    B, T, D = x3d.shape
    h = linear(x3d.reshape(B * T, D), p["w1"], p["b1"], relu=True,
               out_dtype=jnp.bfloat16)
    return linear(h, p["w2"], p["b2"]).reshape(B, T, D)


def encoder_layer(x, p, self_mask, n_head):
    attn = multi_head_attention(x, x, p["self_attn"], self_mask, n_head, is_self=True)
    x = add_layernorm(x, attn, p["norm1_g"], p["norm1_b"])
    x = add_layernorm(x, feed_forward(x, p), p["norm2_g"], p["norm2_b"])
    return x


def decoder_layer(x, mem, p, self_mask, n_head):
    sa = multi_head_attention(x, x, p["self_attn"], self_mask, n_head, is_self=True)
    x = add_layernorm(x, sa, p["norm1_g"], p["norm1_b"])
    # cross-attention: memory_key_padding_mask is None -> no mask input at all
    ca = multi_head_attention(x, mem, p["cross_attn"], None, n_head, is_self=False)
    x = add_layernorm(x, ca, p["norm2_g"], p["norm2_b"])
    x = add_layernorm(x, feed_forward(x, p), p["norm3_g"], p["norm3_b"])
    return x


def seq2seq_transformer_forward(params, enc_inp, dec_inp, tgt_mask,
                                enc_pad_mask, dec_pad_mask, *, n_head):
    # embeddings + positional encoding (dropout = identity in eval mode)
    src = jnp.take(params["enc_emb"], enc_inp, axis=0)            # (B, S, D) f32
    tgt = jnp.take(params["dec_emb"], dec_inp, axis=0)            # (B, T, D) f32
    pe = params["pos_embedding"]
    src = src + pe[: src.shape[1]][None]
    tgt = tgt + pe[: tgt.shape[1]][None]

    # additive masks, kept un-broadcast (no per-head copy in HBM)
    enc_self_mask = jnp.where(enc_pad_mask[:, None, :], NEG_INF, 0.0).astype(jnp.float32)  # (B,1,S)
    dec_self_mask = (tgt_mask.astype(jnp.float32)[None, :, :]
                     + jnp.where(dec_pad_mask[:, None, :], NEG_INF, 0.0).astype(jnp.float32))  # (B,T,T)

    x = src
    for lp in params["enc_layers"]:
        x = encoder_layer(x, lp, enc_self_mask, n_head)
    mem = layernorm(x, params["enc_norm_g"], params["enc_norm_b"])

    y = tgt
    for lp in params["dec_layers"]:
        y = decoder_layer(y, mem, lp, dec_self_mask, n_head)
    y = layernorm(y, params["dec_norm_g"], params["dec_norm_b"])

    B, T, D = y.shape
    logits = linear(y.reshape(B * T, D), params["predict_w"], params["predict_b"])
    return logits.reshape(B, T, -1)


# -------------------------------- parameter init --------------------------------

def init_params(key, d_model, n_head, n_enc, n_dec, d_ff, enc_voc, dec_voc, maxlen=128):
    keys = iter(jax.random.split(key, 512))

    def w(shape, scale=0.02):                     # weights pre-transposed (in,out), bf16
        return (scale * jax.random.normal(next(keys), shape)).astype(jnp.bfloat16)

    def b(shape, scale=0.01):                     # biases in f32
        return (scale * jax.random.normal(next(keys), shape)).astype(jnp.float32)

    def ln():
        return jnp.ones((d_model,), jnp.float32), jnp.zeros((d_model,), jnp.float32)

    def self_mha():
        return {"wqkv": w((d_model, 3 * d_model)), "bqkv": b((3 * d_model,)),
                "wo": w((d_model, d_model)), "bo": b((d_model,))}

    def cross_mha():
        return {"wq": w((d_model, d_model)), "bq": b((d_model,)),
                "wkv": w((d_model, 2 * d_model)), "bkv": b((2 * d_model,)),
                "wo": w((d_model, d_model)), "bo": b((d_model,))}

    def enc_layer_p():
        n1g, n1b = ln(); n2g, n2b = ln()
        return {"self_attn": self_mha(),
                "w1": w((d_model, d_ff)), "b1": b((d_ff,)),
                "w2": w((d_ff, d_model)), "b2": b((d_model,)),
                "norm1_g": n1g, "norm1_b": n1b,
                "norm2_g": n2g, "norm2_b": n2b}

    def dec_layer_p():
        d = enc_layer_p()
        d["cross_attn"] = cross_mha()
        d["norm3_g"], d["norm3_b"] = ln()
        return d

    # sinusoidal positional encoding (same formula as PositionalEncoding)
    den = jnp.exp(-jnp.arange(0, d_model, 2, dtype=jnp.float32) * math.log(10000.0) / d_model)
    pos = jnp.arange(maxlen, dtype=jnp.float32)[:, None]
    pe = jnp.zeros((maxlen, d_model), jnp.float32)
    pe = pe.at[:, 0::2].set(jnp.sin(pos * den))
    pe = pe.at[:, 1::2].set(jnp.cos(pos * den))

    def emb(v):
        return jax.random.normal(next(keys), (v, d_model)).astype(jnp.float32)

    eg, eb = ln(); dg, db = ln()
    return {
        "enc_emb": emb(enc_voc),
        "dec_emb": emb(dec_voc),
        "pos_embedding": pe,
        "enc_layers": [enc_layer_p() for _ in range(n_enc)],
        "dec_layers": [dec_layer_p() for _ in range(n_dec)],
        "enc_norm_g": eg, "enc_norm_b": eb,
        "dec_norm_g": dg, "dec_norm_b": db,
        "predict_w": w((d_model, dec_voc)), "predict_b": b((dec_voc,)),
    }


# -------------------------------------- main -------------------------------------

if __name__ == "__main__":
    d_model, n_head = 32, 4
    num_enc_layers, num_dec_layers = 2, 2
    dim_feedforward = 64
    enc_voc_size, dec_voc_size = 50, 60
    B, S, T = 2, 8, 8

    root = jax.random.PRNGKey(0)
    k_param, k_enc, k_dec = jax.random.split(root, 3)

    params = init_params(k_param, d_model, n_head, num_enc_layers, num_dec_layers,
                         dim_feedforward, enc_voc_size, dec_voc_size)

    enc_inp = jax.random.randint(k_enc, (B, S), 0, enc_voc_size, dtype=jnp.int32)
    dec_inp = jax.random.randint(k_dec, (B, T), 0, dec_voc_size, dtype=jnp.int32)

    # causal target mask (additive float, like generate_square_subsequent_mask)
    idx = jnp.arange(T)
    tgt_mask = jnp.where(idx[None, :] > idx[:, None], NEG_INF, 0.0).astype(jnp.float32)

    # key-padding masks (True = padded): last two positions of batch 1 are pad
    enc_pad_mask = jnp.zeros((B, S), dtype=bool).at[1, S - 2:].set(True)
    dec_pad_mask = jnp.zeros((B, T), dtype=bool).at[1, T - 2:].set(True)

    fwd = jax.jit(partial(seq2seq_transformer_forward, n_head=n_head))
    logits = fwd(params, enc_inp, dec_inp, tgt_mask, enc_pad_mask, dec_pad_mask)
    logits = jax.block_until_ready(logits)

    assert logits.shape == (B, T, dec_voc_size), logits.shape
    assert bool(jnp.all(jnp.isfinite(logits)))
    print("KERNEL_OK")
</pallas_src>

<mosaic_0001>
module attributes {stable_mosaic.version = 11 : i64} {
  func.func @_linear_kernel(%arg0: i32, %arg1: i32, %arg2: i32, %arg3: memref<16x128xbf16, #tpu.memory_space<vmem>>, %arg4: memref<128x128xbf16, #tpu.memory_space<vmem>>, %arg5: memref<1x128xf32, #tpu.memory_space<vmem>>, %arg6: memref<16x128xbf16, #tpu.memory_space<vmem>>, %arg7: memref<16x128xf32, #tpu.memory_space<vmem>>) attributes {dimension_semantics = [#tpu.dimension_semantics<parallel>, #tpu.dimension_semantics<parallel>, #tpu.dimension_semantics<arbitrary>], iteration_bounds = array<i64: 1, 1, 1>, scalar_prefetch = 0 : i64, scratch_operands = 1 : i64, tpu.core_type = #tpu.core_type<tc>, window_params = [{transform_indices = @transform_0, window_bounds = array<i64: 16, 128>}, {transform_indices = @transform_1, window_bounds = array<i64: 128, 128>}, {transform_indices = @transform_2, window_bounds = array<i64: 1, 128>}, {transform_indices = @transform_3, window_bounds = array<i64: 16, 128>}]} {
    %c0_i32 = arith.constant 0 : i32
    %0 = arith.cmpi eq, %arg2, %c0_i32 : i32
    %1 = arith.extui %0 : i1 to i32
    %c0_i32_0 = arith.constant 0 : i32
    %2 = arith.cmpi ne, %1, %c0_i32_0 : i32
    scf.if %2 {
      %cst_10 = arith.constant 0.000000e+00 : f32
      %12 = vector.broadcast %cst_10 : f32 to vector<16x128xf32>
      %c0_11 = arith.constant 0 : index
      %c0_12 = arith.constant 0 : index
      %13 = vector.load %arg7[%c0_11, %c0_12] : memref<16x128xf32, #tpu.memory_space<vmem>>, vector<16x128xf32>
      tpu.vector_store %arg7[%c0_11, %c0_12], %12 {strides = array<i32>} : memref<16x128xf32, #tpu.memory_space<vmem>>, vector<16x128xf32>,
    } else {
    }
    %c0 = arith.constant 0 : index
    %c0_1 = arith.constant 0 : index
    %3 = vector.load %arg7[%c0, %c0_1] : memref<16x128xf32, #tpu.memory_space<vmem>>, vector<16x128xf32>
    %c0_2 = arith.constant 0 : index
    %c0_3 = arith.constant 0 : index
    %4 = vector.load %arg3[%c0_2, %c0_3] : memref<16x128xbf16, #tpu.memory_space<vmem>>, vector<16x128xbf16>
    %c0_4 = arith.constant 0 : index
    %c0_5 = arith.constant 0 : index
    %5 = vector.load %arg4[%c0_4, %c0_5] : memref<128x128xbf16, #tpu.memory_space<vmem>>, vector<128x128xbf16>
    %cst = arith.constant dense<0.000000e+00> : vector<16x128xf32>
    %6 = tpu.matmul %4, %5, %cst {dimension_numbers = #tpu.dot_dimension_numbers<[1], [0], [0], [1], [0, 0, 1, 1], [], []>} : vector<16x128xbf16>, vector<128x128xbf16>, vector<16x128xf32> -> vector<16x128xf32>
    %7 = arith.addf %3, %6 : vector<16x128xf32>
    %c0_6 = arith.constant 0 : index
    %c0_7 = arith.constant 0 : index
    %8 = vector.load %arg7[%c0_6, %c0_7] : memref<16x128xf32, #tpu.memory_space<vmem>>, vector<16x128xf32>
    tpu.vector_store %arg7[%c0_6, %c0_7], %7 {strides = array<i32>} : memref<16x128xf32, #tpu.memory_space<vmem>>, vector<16x128xf32>,
    %c0_i32_8 = arith.constant 0 : i32
    %9 = arith.cmpi eq, %arg2, %c0_i32_8 : i32
    %10 = arith.extui %9 : i1 to i32
    %c0_i32_9 = arith.constant 0 : i32
    %11 = arith.cmpi ne, %10, %c0_i32_9 : i32
    scf.if %11 {
      %c0_10 = arith.constant 0 : index
      %c0_11 = arith.constant 0 : index
      %12 = vector.load %arg7[%c0_10, %c0_11] : memref<16x128xf32, #tpu.memory_space<vmem>>, vector<16x128xf32>
      %c0_12 = arith.constant 0 : index
      %c0_13 = arith.constant 0 : index
      %13 = vector.load %arg5[%c0_12, %c0_13] : memref<1x128xf32, #tpu.memory_space<vmem>>, vector<1x128xf32>
      %14 = vector.broadcast %13 : vector<1x128xf32> to vector<16x128xf32>
      %15 = arith.addf %12, %14 : vector<16x128xf32>
      %16 = arith.truncf %15 : vector<16x128xf32> to vector<16x128xbf16>
      %c0_14 = arith.constant 0 : index
      %c0_15 = arith.constant 0 : index
      %17 = vector.load %arg6[%c0_14, %c0_15] : memref<16x128xbf16, #tpu.memory_space<vmem>>, vector<16x128xbf16>
      tpu.vector_store %arg6[%c0_14, %c0_15], %16 {strides = array<i32>} : memref<16x128xbf16, #tpu.memory_space<vmem>>, vector<16x128xbf16>,
    } else {
    }
    return
  }
  func.func @transform_0(%arg0: i32, %arg1: i32, %arg2: i32) -> (i32, i32) {
    %c0_i32 = arith.constant 0 : i32
    return %arg0, %arg2 : i32, i32
  }
  func.func @transform_1(%arg0: i32, %arg1: i32, %arg2: i32) -> (i32, i32) {
    %c0_i32 = arith.constant 0 : i32
    return %arg2, %arg1 : i32, i32
  }
  func.func @transform_2(%arg0: i32, %arg1: i32, %arg2: i32) -> (i32, i32) {
    %c0_i32 = arith.constant 0 : i32
    %c0_i32_0 = arith.constant 0 : i32
    return %c0_i32, %arg1 : i32, i32
  }
  func.func @transform_3(%arg0: i32, %arg1: i32, %arg2: i32) -> (i32, i32) {
    %c0_i32 = arith.constant 0 : i32
    return %arg0, %arg1 : i32, i32
  }
}

module attributes {stable_mosaic.version = 11 : i64} {
  func.func @_attention_kernel(%arg0: i32, %arg1: i32, %arg2: memref<1x1x8x8xbf16, #tpu.memory_space<vmem>>, %arg3: memref<1x1x8x8xbf16, #tpu.memory_space<vmem>>, %arg4: memref<1x1x8x8xbf16, #tpu.memory_space<vmem>>, %arg5: memref<1x8x8xf32, #tpu.memory_space<vmem>>, %arg6: memref<1x1x8x8xbf16, #tpu.memory_space<vmem>>) attributes {dimension_semantics = [#tpu.dimension_semantics<parallel>, #tpu.dimension_semantics<parallel>], iteration_bounds = array<i64: 2, 4>, scalar_prefetch = 0 : i64, scratch_operands = 0 : i64, tpu.core_type = #tpu.core_type<tc>, window_params = [{transform_indices = @transform_0, window_bounds = array<i64: 1, 1, 8, 8>}, {transform_indices = @transform_1, window_bounds = array<i64: 1, 1, 8, 8>}, {transform_indices = @transform_2, window_bounds = array<i64: 1, 1, 8, 8>}, {transform_indices = @transform_3, window_bounds = array<i64: 1, 8, 8>}, {transform_indices = @transform_4, window_bounds = array<i64: 1, 1, 8, 8>}]} {
    %c0 = arith.constant 0 : index
    %c0_0 = arith.constant 0 : index
    %c0_1 = arith.constant 0 : index
    %c0_2 = arith.constant 0 : index
    %0 = vector.load %arg2[%c0, %c0_0, %c0_1, %c0_2] : memref<1x1x8x8xbf16, #tpu.memory_space<vmem>>, vector<1x1x8x8xbf16>
    %1 = vector.shape_cast %0 : vector<1x1x8x8xbf16> to vector<8x8xbf16>
    %cst = arith.constant 3.535160e-01 : bf16
    %2 = vector.broadcast %cst : bf16 to vector<8x8xbf16>
    %3 = arith.mulf %1, %2 : vector<8x8xbf16>
    %c0_3 = arith.constant 0 : index
    %c0_4 = arith.constant 0 : index
    %c0_5 = arith.constant 0 : index
    %c0_6 = arith.constant 0 : index
    %4 = vector.load %arg3[%c0_3, %c0_4, %c0_5, %c0_6] : memref<1x1x8x8xbf16, #tpu.memory_space<vmem>>, vector<1x1x8x8xbf16>
    %5 = vector.shape_cast %4 : vector<1x1x8x8xbf16> to vector<8x8xbf16>
    %c0_7 = arith.constant 0 : index
    %c0_8 = arith.constant 0 : index
    %c0_9 = arith.constant 0 : index
    %c0_10 = arith.constant 0 : index
    %6 = vector.load %arg4[%c0_7, %c0_8, %c0_9, %c0_10] : memref<1x1x8x8xbf16, #tpu.memory_space<vmem>>, vector<1x1x8x8xbf16>
    %7 = vector.shape_cast %6 : vector<1x1x8x8xbf16> to vector<8x8xbf16>
    %cst_11 = arith.constant dense<0.000000e+00> : vector<8x8xf32>
    %8 = tpu.matmul %3, %5, %cst_11 {dimension_numbers = #tpu.dot_dimension_numbers<[1], [1], [0], [0], [0, 0, 1, 0], [], []>} : vector<8x8xbf16>, vector<8x8xbf16>, vector<8x8xf32> -> vector<8x8xf32>
    %c0_12 = arith.constant 0 : index
    %c0_13 = arith.constant 0 : index
    %c0_14 = arith.constant 0 : index
    %9 = vector.load %arg5[%c0_12, %c0_13, %c0_14] : memref<1x8x8xf32, #tpu.memory_space<vmem>>, vector<1x8x8xf32>
    %10 = vector.shape_cast %9 : vector<1x8x8xf32> to vector<8x8xf32>
    %11 = arith.addf %8, %10 : vector<8x8xf32>
    %cst_15 = arith.constant dense<0xFF800000> : vector<8xf32>
    %12 = vector.multi_reduction <maximumf>, %11, %cst_15 [1] : vector<8x8xf32> to vector<8xf32>
    %13 = vector.shape_cast %12 : vector<8xf32> to vector<8x1xf32>
    %14 = vector.broadcast %13 : vector<8x1xf32> to vector<8x8xf32>
    %15 = arith.subf %11, %14 : vector<8x8xf32>
    %16 = math.exp %15 : vector<8x8xf32>
    %cst_16 = arith.constant dense<0.000000e+00> : vector<8xf32>
    %17 = vector.multi_reduction <add>, %16, %cst_16 [1] : vector<8x8xf32> to vector<8xf32>
    %18 = vector.shape_cast %17 : vector<8xf32> to vector<8x1xf32>
    %19 = tpu.reciprocal %18 {approx = true} : vector<8x1xf32> -> vector<8x1xf32>
    %20 = vector.broadcast %19 : vector<8x1xf32> to vector<8x8xf32>
    %21 = arith.mulf %16, %20 : vector<8x8xf32>
    %22 = arith.truncf %21 : vector<8x8xf32> to vector<8x8xbf16>
    %cst_17 = arith.constant dense<0.000000e+00> : vector<8x8xf32>
    %23 = tpu.matmul %22, %7, %cst_17 {dimension_numbers = #tpu.dot_dimension_numbers<[1], [0], [0], [1], [0, 0, 1, 1], [], []>} : vector<8x8xbf16>, vector<8x8xbf16>, vector<8x8xf32> -> vector<8x8xf32>
    %24 = arith.truncf %23 : vector<8x8xf32> to vector<8x8xbf16>
    %c0_18 = arith.constant 0 : index
    %c0_19 = arith.constant 0 : index
    %c0_20 = arith.constant 0 : index
    %c0_21 = arith.constant 0 : index
    %25 = vector.load %arg6[%c0_18, %c0_19, %c0_20, %c0_21] : memref<1x1x8x8xbf16, #tpu.memory_space<vmem>>, vector<1x1x8x8xbf16>
    %26 = vector.shape_cast %25 : vector<1x1x8x8xbf16> to vector<8x8xbf16>
    %27 = vector.shape_cast %24 : vector<8x8xbf16> to vector<1x1x8x8xbf16>
    tpu.vector_store %arg6[%c0_18, %c0_19, %c0_20, %c0_21], %27 {strides = array<i32>} : memref<1x1x8x8xbf16, #tpu.memory_space<vmem>>, vector<1x1x8x8xbf16>,
    return
  }
  func.func @transform_0(%arg0: i32, %arg1: i32) -> (i32, i32, i32, i32) {
    %c0_i32 = arith.constant 0 : i32
    %c0_i32_0 = arith.constant 0 : i32
    %c0_i32_1 = arith.constant 0 : i32
    return %arg0, %arg1, %c0_i32, %c0_i32_0 : i32, i32, i32, i32
  }
  func.func @transform_1(%arg0: i32, %arg1: i32) -> (i32, i32, i32, i32) {
    %c0_i32 = arith.constant 0 : i32
    %c0_i32_0 = arith.constant 0 : i32
    %c0_i32_1 = arith.constant 0 : i32
    return %arg0, %arg1, %c0_i32, %c0_i32_0 : i32, i32, i32, i32
  }
  func.func @transform_2(%arg0: i32, %arg1: i32) -> (i32, i32, i32, i32) {
    %c0_i32 = arith.constant 0 : i32
    %c0_i32_0 = arith.constant 0 : i32
    %c0_i32_1 = arith.constant 0 : i32
    return %arg0, %arg1, %c0_i32, %c0_i32_0 : i32, i32, i32, i32
  }
  func.func @transform_3(%arg0: i32, %arg1: i32) -> (i32, i32, i32) {
    %c0_i32 = arith.constant 0 : i32
    %c0_i32_0 = arith.constant 0 : i32
    %c0_i32_1 = arith.constant 0 : i32
    return %arg0, %c0_i32, %c0_i32_0 : i32, i32, i32
  }
  func.func @transform_4(%arg0: i32, %arg1: i32) -> (i32, i32, i32, i32) {
    %c0_i32 = arith.constant 0 : i32
    %c0_i32_0 = arith.constant 0 : i32
    %c0_i32_1 = arith.constant 0 : i32
    return %arg0, %arg1, %c0_i32, %c0_i32_0 : i32, i32, i32, i32
  }
}

module attributes {stable_mosaic.version = 11 : i64} {
  func.func @_linear_kernel(%arg0: i32, %arg1: i32, %arg2: i32, %arg3: memref<16x128xbf16, #tpu.memory_space<vmem>>, %arg4: memref<128x128xbf16, #tpu.memory_space<vmem>>, %arg5: memref<1x128xf32, #tpu.memory_space<vmem>>, %arg6: memref<16x128xf32, #tpu.memory_space<vmem>>, %arg7: memref<16x128xf32, #tpu.memory_space<vmem>>) attributes {dimension_semantics = [#tpu.dimension_semantics<parallel>, #tpu.dimension_semantics<parallel>, #tpu.dimension_semantics<arbitrary>], iteration_bounds = array<i64: 1, 1, 1>, scalar_prefetch = 0 : i64, scratch_operands = 1 : i64, tpu.core_type = #tpu.core_type<tc>, window_params = [{transform_indices = @transform_0, window_bounds = array<i64: 16, 128>}, {transform_indices = @transform_1, window_bounds = array<i64: 128, 128>}, {transform_indices = @transform_2, window_bounds = array<i64: 1, 128>}, {transform_indices = @transform_3, window_bounds = array<i64: 16, 128>}]} {
    %c0_i32 = arith.constant 0 : i32
    %0 = arith.cmpi eq, %arg2, %c0_i32 : i32
    %1 = arith.extui %0 : i1 to i32
    %c0_i32_0 = arith.constant 0 : i32
    %2 = arith.cmpi ne, %1, %c0_i32_0 : i32
    scf.if %2 {
      %cst_10 = arith.constant 0.000000e+00 : f32
      %12 = vector.broadcast %cst_10 : f32 to vector<16x128xf32>
      %c0_11 = arith.constant 0 : index
      %c0_12 = arith.constant 0 : index
      %13 = vector.load %arg7[%c0_11, %c0_12] : memref<16x128xf32, #tpu.memory_space<vmem>>, vector<16x128xf32>
      tpu.vector_store %arg7[%c0_11, %c0_12], %12 {strides = array<i32>} : memref<16x128xf32, #tpu.memory_space<vmem>>, vector<16x128xf32>,
    } else {
    }
    %c0 = arith.constant 0 : index
    %c0_1 = arith.constant 0 : index
    %3 = vector.load %arg7[%c0, %c0_1] : memref<16x128xf32, #tpu.memory_space<vmem>>, vector<16x128xf32>
    %c0_2 = arith.constant 0 : index
    %c0_3 = arith.constant 0 : index
    %4 = vector.load %arg3[%c0_2, %c0_3] : memref<16x128xbf16, #tpu.memory_space<vmem>>, vector<16x128xbf16>
    %c0_4 = arith.constant 0 : index
    %c0_5 = arith.constant 0 : index
    %5 = vector.load %arg4[%c0_4, %c0_5] : memref<128x128xbf16, #tpu.memory_space<vmem>>, vector<128x128xbf16>
    %cst = arith.constant dense<0.000000e+00> : vector<16x128xf32>
    %6 = tpu.matmul %4, %5, %cst {dimension_numbers = #tpu.dot_dimension_numbers<[1], [0], [0], [1], [0, 0, 1, 1], [], []>} : vector<16x128xbf16>, vector<128x128xbf16>, vector<16x128xf32> -> vector<16x128xf32>
    %7 = arith.addf %3, %6 : vector<16x128xf32>
    %c0_6 = arith.constant 0 : index
    %c0_7 = arith.constant 0 : index
    %8 = vector.load %arg7[%c0_6, %c0_7] : memref<16x128xf32, #tpu.memory_space<vmem>>, vector<16x128xf32>
    tpu.vector_store %arg7[%c0_6, %c0_7], %7 {strides = array<i32>} : memref<16x128xf32, #tpu.memory_space<vmem>>, vector<16x128xf32>,
    %c0_i32_8 = arith.constant 0 : i32
    %9 = arith.cmpi eq, %arg2, %c0_i32_8 : i32
    %10 = arith.extui %9 : i1 to i32
    %c0_i32_9 = arith.constant 0 : i32
    %11 = arith.cmpi ne, %10, %c0_i32_9 : i32
    scf.if %11 {
      %c0_10 = arith.constant 0 : index
      %c0_11 = arith.constant 0 : index
      %12 = vector.load %arg7[%c0_10, %c0_11] : memref<16x128xf32, #tpu.memory_space<vmem>>, vector<16x128xf32>
      %c0_12 = arith.constant 0 : index
      %c0_13 = arith.constant 0 : index
      %13 = vector.load %arg5[%c0_12, %c0_13] : memref<1x128xf32, #tpu.memory_space<vmem>>, vector<1x128xf32>
      %14 = vector.broadcast %13 : vector<1x128xf32> to vector<16x128xf32>
      %15 = arith.addf %12, %14 : vector<16x128xf32>
      %c0_14 = arith.constant 0 : index
      %c0_15 = arith.constant 0 : index
      %16 = vector.load %arg6[%c0_14, %c0_15] : memref<16x128xf32, #tpu.memory_space<vmem>>, vector<16x128xf32>
      tpu.vector_store %arg6[%c0_14, %c0_15], %15 {strides = array<i32>} : memref<16x128xf32, #tpu.memory_space<vmem>>, vector<16x128xf32>,
    } else {
    }
    return
  }
  func.func @transform_0(%arg0: i32, %arg1: i32, %arg2: i32) -> (i32, i32) {
    %c0_i32 = arith.constant 0 : i32
    return %arg0, %arg2 : i32, i32
  }
  func.func @transform_1(%arg0: i32, %arg1: i32, %arg2: i32) -> (i32, i32) {
    %c0_i32 = arith.constant 0 : i32
    return %arg2, %arg1 : i32, i32
  }
  func.func @transform_2(%arg0: i32, %arg1: i32, %arg2: i32) -> (i32, i32) {
    %c0_i32 = arith.constant 0 : i32
    %c0_i32_0 = arith.constant 0 : i32
    return %c0_i32, %arg1 : i32, i32
  }
  func.func @transform_3(%arg0: i32, %arg1: i32, %arg2: i32) -> (i32, i32) {
    %c0_i32 = arith.constant 0 : i32
    return %arg0, %arg1 : i32, i32
  }
}

module attributes {stable_mosaic.version = 11 : i64} {
  func.func @_add_ln_kernel(%arg0: i32, %arg1: memref<16x32xf32, #tpu.memory_space<vmem>>, %arg2: memref<16x32xf32, #tpu.memory_space<vmem>>, %arg3: memref<1x32xf32, #tpu.memory_space<vmem>>, %arg4: memref<1x32xf32, #tpu.memory_space<vmem>>, %arg5: memref<16x32xf32, #tpu.memory_space<vmem>>) attributes {dimension_semantics = [#tpu.dimension_semantics<parallel>], iteration_bounds = array<i64: 1>, scalar_prefetch = 0 : i64, scratch_operands = 0 : i64, tpu.core_type = #tpu.core_type<tc>, window_params = [{transform_indices = @transform_0, window_bounds = array<i64: 16, 32>}, {transform_indices = @transform_1, window_bounds = array<i64: 16, 32>}, {pipeline_mode = #tpu.pipeline_mode<synchronous>, transform_indices = @transform_2, window_bounds = array<i64: 1, 32>}, {pipeline_mode = #tpu.pipeline_mode<synchronous>, transform_indices = @transform_3, window_bounds = array<i64: 1, 32>}, {transform_indices = @transform_4, window_bounds = array<i64: 16, 32>}]} {
    %c0 = arith.constant 0 : index
    %c0_0 = arith.constant 0 : index
    %0 = vector.load %arg1[%c0, %c0_0] : memref<16x32xf32, #tpu.memory_space<vmem>>, vector<16x32xf32>
    %c0_1 = arith.constant 0 : index
    %c0_2 = arith.constant 0 : index
    %1 = vector.load %arg2[%c0_1, %c0_2] : memref<16x32xf32, #tpu.memory_space<vmem>>, vector<16x32xf32>
    %2 = arith.addf %0, %1 : vector<16x32xf32>
    %cst = arith.constant dense<0.000000e+00> : vector<16xf32>
    %3 = vector.multi_reduction <add>, %2, %cst [1] : vector<16x32xf32> to vector<16xf32>
    %4 = vector.shape_cast %3 : vector<16xf32> to vector<16x1xf32>
    %cst_3 = arith.constant 3.200000e+01 : f32
    %5 = vector.broadcast %cst_3 : f32 to vector<16x1xf32>
    %6 = arith.divf %4, %5 : vector<16x1xf32>
    %7 = vector.broadcast %6 : vector<16x1xf32> to vector<16x32xf32>
    %8 = arith.subf %2, %7 : vector<16x32xf32>
    %9 = arith.mulf %8, %8 : vector<16x32xf32>
    %cst_4 = arith.constant dense<0.000000e+00> : vector<16xf32>
    %10 = vector.multi_reduction <add>, %9, %cst_4 [1] : vector<16x32xf32> to vector<16xf32>
    %11 = vector.shape_cast %10 : vector<16xf32> to vector<16x1xf32>
    %cst_5 = arith.constant 3.200000e+01 : f32
    %12 = vector.broadcast %cst_5 : f32 to vector<16x1xf32>
    %13 = arith.divf %11, %12 : vector<16x1xf32>
    %14 = vector.broadcast %6 : vector<16x1xf32> to vector<16x32xf32>
    %15 = arith.subf %2, %14 : vector<16x32xf32>
    %cst_6 = arith.constant 9.99999974E-6 : f32
    %16 = vector.broadcast %cst_6 : f32 to vector<16x1xf32>
    %17 = arith.addf %13, %16 : vector<16x1xf32>
    %18 = math.rsqrt %17 : vector<16x1xf32>
    %19 = vector.broadcast %18 : vector<16x1xf32> to vector<16x32xf32>
    %20 = arith.mulf %15, %19 : vector<16x32xf32>
    %c0_7 = arith.constant 0 : index
    %c0_8 = arith.constant 0 : index
    %21 = vector.load %arg3[%c0_7, %c0_8] : memref<1x32xf32, #tpu.memory_space<vmem>>, vector<1x32xf32>
    %22 = vector.broadcast %21 : vector<1x32xf32> to vector<16x32xf32>
    %23 = arith.mulf %20, %22 : vector<16x32xf32>
    %c0_9 = arith.constant 0 : index
    %c0_10 = arith.constant 0 : index
    %24 = vector.load %arg4[%c0_9, %c0_10] : memref<1x32xf32, #tpu.memory_space<vmem>>, vector<1x32xf32>
    %25 = vector.broadcast %24 : vector<1x32xf32> to vector<16x32xf32>
    %26 = arith.addf %23, %25 : vector<16x32xf32>
    %c0_11 = arith.constant 0 : index
    %c0_12 = arith.constant 0 : index
    %27 = vector.load %arg5[%c0_11, %c0_12] : memref<16x32xf32, #tpu.memory_space<vmem>>, vector<16x32xf32>
    tpu.vector_store %arg5[%c0_11, %c0_12], %26 {strides = array<i32>} : memref<16x32xf32, #tpu.memory_space<vmem>>, vector<16x32xf32>,
    return
  }
  func.func @transform_0(%arg0: i32) -> (i32, i32) {
    %c0_i32 = arith.constant 0 : i32
    %c0_i32_0 = arith.constant 0 : i32
    return %arg0, %c0_i32 : i32, i32
  }
  func.func @transform_1(%arg0: i32) -> (i32, i32) {
    %c0_i32 = arith.constant 0 : i32
    %c0_i32_0 = arith.constant 0 : i32
    return %arg0, %c0_i32 : i32, i32
  }
  func.func @transform_2(%arg0: i32) -> (i32, i32) {
    %c0_i32 = arith.constant 0 : i32
    %c0_i32_0 = arith.constant 0 : i32
    %c0_i32_1 = arith.constant 0 : i32
    return %c0_i32, %c0_i32_0 : i32, i32
  }
  func.func @transform_3(%arg0: i32) -> (i32, i32) {
    %c0_i32 = arith.constant 0 : i32
    %c0_i32_0 = arith.constant 0 : i32
    %c0_i32_1 = arith.constant 0 : i32
    return %c0_i32, %c0_i32_0 : i32, i32
  }
  func.func @transform_4(%arg0: i32) -> (i32, i32) {
    %c0_i32 = arith.constant 0 : i32
    %c0_i32_0 = arith.constant 0 : i32
    return %arg0, %c0_i32 : i32, i32
  }
}

module attributes {stable_mosaic.version = 11 : i64} {
  func.func @_linear_kernel(%arg0: i32, %arg1: i32, %arg2: i32, %arg3: memref<16x128xbf16, #tpu.memory_space<vmem>>, %arg4: memref<128x128xbf16, #tpu.memory_space<vmem>>, %arg5: memref<1x128xf32, #tpu.memory_space<vmem>>, %arg6: memref<16x128xbf16, #tpu.memory_space<vmem>>, %arg7: memref<16x128xf32, #tpu.memory_space<vmem>>) attributes {dimension_semantics = [#tpu.dimension_semantics<parallel>, #tpu.dimension_semantics<parallel>, #tpu.dimension_semantics<arbitrary>], iteration_bounds = array<i64: 1, 1, 1>, scalar_prefetch = 0 : i64, scratch_operands = 1 : i64, tpu.core_type = #tpu.core_type<tc>, window_params = [{transform_indices = @transform_0, window_bounds = array<i64: 16, 128>}, {transform_indices = @transform_1, window_bounds = array<i64: 128, 128>}, {transform_indices = @transform_2, window_bounds = array<i64: 1, 128>}, {transform_indices = @transform_3, window_bounds = array<i64: 16, 128>}]} {
    %c0_i32 = arith.constant 0 : i32
    %0 = arith.cmpi eq, %arg2, %c0_i32 : i32
    %1 = arith.extui %0 : i1 to i32
    %c0_i32_0 = arith.constant 0 : i32
    %2 = arith.cmpi ne, %1, %c0_i32_0 : i32
    scf.if %2 {
      %cst_10 = arith.constant 0.000000e+00 : f32
      %12 = vector.broadcast %cst_10 : f32 to vector<16x128xf32>
      %c0_11 = arith.constant 0 : index
      %c0_12 = arith.constant 0 : index
      %13 = vector.load %arg7[%c0_11, %c0_12] : memref<16x128xf32, #tpu.memory_space<vmem>>, vector<16x128xf32>
      tpu.vector_store %arg7[%c0_11, %c0_12], %12 {strides = array<i32>} : memref<16x128xf32, #tpu.memory_space<vmem>>, vector<16x128xf32>,
    } else {
    }
    %c0 = arith.constant 0 : index
    %c0_1 = arith.constant 0 : index
    %3 = vector.load %arg7[%c0, %c0_1] : memref<16x128xf32, #tpu.memory_space<vmem>>, vector<16x128xf32>
    %c0_2 = arith.constant 0 : index
    %c0_3 = arith.constant 0 : index
    %4 = vector.load %arg3[%c0_2, %c0_3] : memref<16x128xbf16, #tpu.memory_space<vmem>>, vector<16x128xbf16>
    %c0_4 = arith.constant 0 : index
    %c0_5 = arith.constant 0 : index
    %5 = vector.load %arg4[%c0_4, %c0_5] : memref<128x128xbf16, #tpu.memory_space<vmem>>, vector<128x128xbf16>
    %cst = arith.constant dense<0.000000e+00> : vector<16x128xf32>
    %6 = tpu.matmul %4, %5, %cst {dimension_numbers = #tpu.dot_dimension_numbers<[1], [0], [0], [1], [0, 0, 1, 1], [], []>} : vector<16x128xbf16>, vector<128x128xbf16>, vector<16x128xf32> -> vector<16x128xf32>
    %7 = arith.addf %3, %6 : vector<16x128xf32>
    %c0_6 = arith.constant 0 : index
    %c0_7 = arith.constant 0 : index
    %8 = vector.load %arg7[%c0_6, %c0_7] : memref<16x128xf32, #tpu.memory_space<vmem>>, vector<16x128xf32>
    tpu.vector_store %arg7[%c0_6, %c0_7], %7 {strides = array<i32>} : memref<16x128xf32, #tpu.memory_space<vmem>>, vector<16x128xf32>,
    %c0_i32_8 = arith.constant 0 : i32
    %9 = arith.cmpi eq, %arg2, %c0_i32_8 : i32
    %10 = arith.extui %9 : i1 to i32
    %c0_i32_9 = arith.constant 0 : i32
    %11 = arith.cmpi ne, %10, %c0_i32_9 : i32
    scf.if %11 {
      %c0_10 = arith.constant 0 : index
      %c0_11 = arith.constant 0 : index
      %12 = vector.load %arg7[%c0_10, %c0_11] : memref<16x128xf32, #tpu.memory_space<vmem>>, vector<16x128xf32>
      %c0_12 = arith.constant 0 : index
      %c0_13 = arith.constant 0 : index
      %13 = vector.load %arg5[%c0_12, %c0_13] : memref<1x128xf32, #tpu.memory_space<vmem>>, vector<1x128xf32>
      %14 = vector.broadcast %13 : vector<1x128xf32> to vector<16x128xf32>
      %15 = arith.addf %12, %14 : vector<16x128xf32>
      %cst_14 = arith.constant 0.000000e+00 : f32
      %16 = vector.broadcast %cst_14 : f32 to vector<16x128xf32>
      %17 = arith.maximumf %15, %16 : vector<16x128xf32>
      %18 = arith.truncf %17 : vector<16x128xf32> to vector<16x128xbf16>
      %c0_15 = arith.constant 0 : index
      %c0_16 = arith.constant 0 : index
      %19 = vector.load %arg6[%c0_15, %c0_16] : memref<16x128xbf16, #tpu.memory_space<vmem>>, vector<16x128xbf16>
      tpu.vector_store %arg6[%c0_15, %c0_16], %18 {strides = array<i32>} : memref<16x128xbf16, #tpu.memory_space<vmem>>, vector<16x128xbf16>,
    } else {
    }
    return
  }
  func.func @transform_0(%arg0: i32, %arg1: i32, %arg2: i32) -> (i32, i32) {
    %c0_i32 = arith.constant 0 : i32
    return %arg0, %arg2 : i32, i32
  }
  func.func @transform_1(%arg0: i32, %arg1: i32, %arg2: i32) -> (i32, i32) {
    %c0_i32 = arith.constant 0 : i32
    return %arg2, %arg1 : i32, i32
  }
  func.func @transform_2(%arg0: i32, %arg1: i32, %arg2: i32) -> (i32, i32) {
    %c0_i32 = arith.constant 0 : i32
    %c0_i32_0 = arith.constant 0 : i32
    return %c0_i32, %arg1 : i32, i32
  }
  func.func @transform_3(%arg0: i32, %arg1: i32, %arg2: i32) -> (i32, i32) {
    %c0_i32 = arith.constant 0 : i32
    return %arg0, %arg1 : i32, i32
  }
}

module attributes {stable_mosaic.version = 11 : i64} {
  func.func @_attention_kernel(%arg0: i32, %arg1: i32, %arg2: memref<1x1x8x8xbf16, #tpu.memory_space<vmem>>, %arg3: memref<1x1x8x8xbf16, #tpu.memory_space<vmem>>, %arg4: memref<1x1x8x8xbf16, #tpu.memory_space<vmem>>, %arg5: memref<1x1x8xf32, #tpu.memory_space<vmem>>, %arg6: memref<1x1x8x8xbf16, #tpu.memory_space<vmem>>) attributes {dimension_semantics = [#tpu.dimension_semantics<parallel>, #tpu.dimension_semantics<parallel>], iteration_bounds = array<i64: 2, 4>, scalar_prefetch = 0 : i64, scratch_operands = 0 : i64, tpu.core_type = #tpu.core_type<tc>, window_params = [{transform_indices = @transform_0, window_bounds = array<i64: 1, 1, 8, 8>}, {transform_indices = @transform_1, window_bounds = array<i64: 1, 1, 8, 8>}, {transform_indices = @transform_2, window_bounds = array<i64: 1, 1, 8, 8>}, {transform_indices = @transform_3, window_bounds = array<i64: 1, 1, 8>}, {transform_indices = @transform_4, window_bounds = array<i64: 1, 1, 8, 8>}]} {
    %c0 = arith.constant 0 : index
    %c0_0 = arith.constant 0 : index
    %c0_1 = arith.constant 0 : index
    %c0_2 = arith.constant 0 : index
    %0 = vector.load %arg2[%c0, %c0_0, %c0_1, %c0_2] : memref<1x1x8x8xbf16, #tpu.memory_space<vmem>>, vector<1x1x8x8xbf16>
    %1 = vector.shape_cast %0 : vector<1x1x8x8xbf16> to vector<8x8xbf16>
    %cst = arith.constant 3.535160e-01 : bf16
    %2 = vector.broadcast %cst : bf16 to vector<8x8xbf16>
    %3 = arith.mulf %1, %2 : vector<8x8xbf16>
    %c0_3 = arith.constant 0 : index
    %c0_4 = arith.constant 0 : index
    %c0_5 = arith.constant 0 : index
    %c0_6 = arith.constant 0 : index
    %4 = vector.load %arg3[%c0_3, %c0_4, %c0_5, %c0_6] : memref<1x1x8x8xbf16, #tpu.memory_space<vmem>>, vector<1x1x8x8xbf16>
    %5 = vector.shape_cast %4 : vector<1x1x8x8xbf16> to vector<8x8xbf16>
    %c0_7 = arith.constant 0 : index
    %c0_8 = arith.constant 0 : index
    %c0_9 = arith.constant 0 : index
    %c0_10 = arith.constant 0 : index
    %6 = vector.load %arg4[%c0_7, %c0_8, %c0_9, %c0_10] : memref<1x1x8x8xbf16, #tpu.memory_space<vmem>>, vector<1x1x8x8xbf16>
    %7 = vector.shape_cast %6 : vector<1x1x8x8xbf16> to vector<8x8xbf16>
    %cst_11 = arith.constant dense<0.000000e+00> : vector<8x8xf32>
    %8 = tpu.matmul %3, %5, %cst_11 {dimension_numbers = #tpu.dot_dimension_numbers<[1], [1], [0], [0], [0, 0, 1, 0], [], []>} : vector<8x8xbf16>, vector<8x8xbf16>, vector<8x8xf32> -> vector<8x8xf32>
    %c0_12 = arith.constant 0 : index
    %c0_13 = arith.constant 0 : index
    %c0_14 = arith.constant 0 : index
    %9 = vector.load %arg5[%c0_12, %c0_13, %c0_14] : memref<1x1x8xf32, #tpu.memory_space<vmem>>, vector<1x1x8xf32>
    %10 = vector.shape_cast %9 : vector<1x1x8xf32> to vector<1x8xf32>
    %11 = vector.broadcast %10 : vector<1x8xf32> to vector<8x8xf32>
    %12 = arith.addf %8, %11 : vector<8x8xf32>
    %cst_15 = arith.constant dense<0xFF800000> : vector<8xf32>
    %13 = vector.multi_reduction <maximumf>, %12, %cst_15 [1] : vector<8x8xf32> to vector<8xf32>
    %14 = vector.shape_cast %13 : vector<8xf32> to vector<8x1xf32>
    %15 = vector.broadcast %14 : vector<8x1xf32> to vector<8x8xf32>
    %16 = arith.subf %12, %15 : vector<8x8xf32>
    %17 = math.exp %16 : vector<8x8xf32>
    %cst_16 = arith.constant dense<0.000000e+00> : vector<8xf32>
    %18 = vector.multi_reduction <add>, %17, %cst_16 [1] : vector<8x8xf32> to vector<8xf32>
    %19 = vector.shape_cast %18 : vector<8xf32> to vector<8x1xf32>
    %20 = tpu.reciprocal %19 {approx = true} : vector<8x1xf32> -> vector<8x1xf32>
    %21 = vector.broadcast %20 : vector<8x1xf32> to vector<8x8xf32>
    %22 = arith.mulf %17, %21 : vector<8x8xf32>
    %23 = arith.truncf %22 : vector<8x8xf32> to vector<8x8xbf16>
    %cst_17 = arith.constant dense<0.000000e+00> : vector<8x8xf32>
    %24 = tpu.matmul %23, %7, %cst_17 {dimension_numbers = #tpu.dot_dimension_numbers<[1], [0], [0], [1], [0, 0, 1, 1], [], []>} : vector<8x8xbf16>, vector<8x8xbf16>, vector<8x8xf32> -> vector<8x8xf32>
    %25 = arith.truncf %24 : vector<8x8xf32> to vector<8x8xbf16>
    %c0_18 = arith.constant 0 : index
    %c0_19 = arith.constant 0 : index
    %c0_20 = arith.constant 0 : index
    %c0_21 = arith.constant 0 : index
    %26 = vector.load %arg6[%c0_18, %c0_19, %c0_20, %c0_21] : memref<1x1x8x8xbf16, #tpu.memory_space<vmem>>, vector<1x1x8x8xbf16>
    %27 = vector.shape_cast %26 : vector<1x1x8x8xbf16> to vector<8x8xbf16>
    %28 = vector.shape_cast %25 : vector<8x8xbf16> to vector<1x1x8x8xbf16>
    tpu.vector_store %arg6[%c0_18, %c0_19, %c0_20, %c0_21], %28 {strides = array<i32>} : memref<1x1x8x8xbf16, #tpu.memory_space<vmem>>, vector<1x1x8x8xbf16>,
    return
  }
  func.func @transform_0(%arg0: i32, %arg1: i32) -> (i32, i32, i32, i32) {
    %c0_i32 = arith.constant 0 : i32
    %c0_i32_0 = arith.constant 0 : i32
    %c0_i32_1 = arith.constant 0 : i32
    return %arg0, %arg1, %c0_i32, %c0_i32_0 : i32, i32, i32, i32
  }
  func.func @transform_1(%arg0: i32, %arg1: i32) -> (i32, i32, i32, i32) {
    %c0_i32 = arith.constant 0 : i32
    %c0_i32_0 = arith.constant 0 : i32
    %c0_i32_1 = arith.constant 0 : i32
    return %arg0, %arg1, %c0_i32, %c0_i32_0 : i32, i32, i32, i32
  }
  func.func @transform_2(%arg0: i32, %arg1: i32) -> (i32, i32, i32, i32) {
    %c0_i32 = arith.constant 0 : i32
    %c0_i32_0 = arith.constant 0 : i32
    %c0_i32_1 = arith.constant 0 : i32
    return %arg0, %arg1, %c0_i32, %c0_i32_0 : i32, i32, i32, i32
  }
  func.func @transform_3(%arg0: i32, %arg1: i32) -> (i32, i32, i32) {
    %c0_i32 = arith.constant 0 : i32
    %c0_i32_0 = arith.constant 0 : i32
    %c0_i32_1 = arith.constant 0 : i32
    return %arg0, %c0_i32, %c0_i32_0 : i32, i32, i32
  }
  func.func @transform_4(%arg0: i32, %arg1: i32) -> (i32, i32, i32, i32) {
    %c0_i32 = arith.constant 0 : i32
    %c0_i32_0 = arith.constant 0 : i32
    %c0_i32_1 = arith.constant 0 : i32
    return %arg0, %arg1, %c0_i32, %c0_i32_0 : i32, i32, i32, i32
  }
}

module attributes {stable_mosaic.version = 11 : i64} {
  func.func @_ln_kernel(%arg0: i32, %arg1: memref<16x32xf32, #tpu.memory_space<vmem>>, %arg2: memref<1x32xf32, #tpu.memory_space<vmem>>, %arg3: memref<1x32xf32, #tpu.memory_space<vmem>>, %arg4: memref<16x32xf32, #tpu.memory_space<vmem>>) attributes {dimension_semantics = [#tpu.dimension_semantics<parallel>], iteration_bounds = array<i64: 1>, scalar_prefetch = 0 : i64, scratch_operands = 0 : i64, tpu.core_type = #tpu.core_type<tc>, window_params = [{transform_indices = @transform_0, window_bounds = array<i64: 16, 32>}, {pipeline_mode = #tpu.pipeline_mode<synchronous>, transform_indices = @transform_1, window_bounds = array<i64: 1, 32>}, {pipeline_mode = #tpu.pipeline_mode<synchronous>, transform_indices = @transform_2, window_bounds = array<i64: 1, 32>}, {transform_indices = @transform_3, window_bounds = array<i64: 16, 32>}]} {
    %c0 = arith.constant 0 : index
    %c0_0 = arith.constant 0 : index
    %0 = vector.load %arg1[%c0, %c0_0] : memref<16x32xf32, #tpu.memory_space<vmem>>, vector<16x32xf32>
    %cst = arith.constant dense<0.000000e+00> : vector<16xf32>
    %1 = vector.multi_reduction <add>, %0, %cst [1] : vector<16x32xf32> to vector<16xf32>
    %2 = vector.shape_cast %1 : vector<16xf32> to vector<16x1xf32>
    %cst_1 = arith.constant 3.200000e+01 : f32
    %3 = vector.broadcast %cst_1 : f32 to vector<16x1xf32>
    %4 = arith.divf %2, %3 : vector<16x1xf32>
    %5 = vector.broadcast %4 : vector<16x1xf32> to vector<16x32xf32>
    %6 = arith.subf %0, %5 : vector<16x32xf32>
    %7 = arith.mulf %6, %6 : vector<16x32xf32>
    %cst_2 = arith.constant dense<0.000000e+00> : vector<16xf32>
    %8 = vector.multi_reduction <add>, %7, %cst_2 [1] : vector<16x32xf32> to vector<16xf32>
    %9 = vector.shape_cast %8 : vector<16xf32> to vector<16x1xf32>
    %cst_3 = arith.constant 3.200000e+01 : f32
    %10 = vector.broadcast %cst_3 : f32 to vector<16x1xf32>
    %11 = arith.divf %9, %10 : vector<16x1xf32>
    %12 = vector.broadcast %4 : vector<16x1xf32> to vector<16x32xf32>
    %13 = arith.subf %0, %12 : vector<16x32xf32>
    %cst_4 = arith.constant 9.99999974E-6 : f32
    %14 = vector.broadcast %cst_4 : f32 to vector<16x1xf32>
    %15 = arith.addf %11, %14 : vector<16x1xf32>
    %16 = math.rsqrt %15 : vector<16x1xf32>
    %17 = vector.broadcast %16 : vector<16x1xf32> to vector<16x32xf32>
    %18 = arith.mulf %13, %17 : vector<16x32xf32>
    %c0_5 = arith.constant 0 : index
    %c0_6 = arith.constant 0 : index
    %19 = vector.load %arg2[%c0_5, %c0_6] : memref<1x32xf32, #tpu.memory_space<vmem>>, vector<1x32xf32>
    %20 = vector.broadcast %19 : vector<1x32xf32> to vector<16x32xf32>
    %21 = arith.mulf %18, %20 : vector<16x32xf32>
    %c0_7 = arith.constant 0 : index
    %c0_8 = arith.constant 0 : index
    %22 = vector.load %arg3[%c0_7, %c0_8] : memref<1x32xf32, #tpu.memory_space<vmem>>, vector<1x32xf32>
    %23 = vector.broadcast %22 : vector<1x32xf32> to vector<16x32xf32>
    %24 = arith.addf %21, %23 : vector<16x32xf32>
    %c0_9 = arith.constant 0 : index
    %c0_10 = arith.constant 0 : index
    %25 = vector.load %arg4[%c0_9, %c0_10] : memref<16x32xf32, #tpu.memory_space<vmem>>, vector<16x32xf32>
    tpu.vector_store %arg4[%c0_9, %c0_10], %24 {strides = array<i32>} : memref<16x32xf32, #tpu.memory_space<vmem>>, vector<16x32xf32>,
    return
  }
  func.func @transform_0(%arg0: i32) -> (i32, i32) {
    %c0_i32 = arith.constant 0 : i32
    %c0_i32_0 = arith.constant 0 : i32
    return %arg0, %c0_i32 : i32, i32
  }
  func.func @transform_1(%arg0: i32) -> (i32, i32) {
    %c0_i32 = arith.constant 0 : i32
    %c0_i32_0 = arith.constant 0 : i32
    %c0_i32_1 = arith.constant 0 : i32
    return %c0_i32, %c0_i32_0 : i32, i32
  }
  func.func @transform_2(%arg0: i32) -> (i32, i32) {
    %c0_i32 = arith.constant 0 : i32
    %c0_i32_0 = arith.constant 0 : i32
    %c0_i32_1 = arith.constant 0 : i32
    return %c0_i32, %c0_i32_0 : i32, i32
  }
  func.func @transform_3(%arg0: i32) -> (i32, i32) {
    %c0_i32 = arith.constant 0 : i32
    %c0_i32_0 = arith.constant 0 : i32
    return %arg0, %c0_i32 : i32, i32
  }
}

module attributes {stable_mosaic.version = 11 : i64} {
  func.func @_attention_kernel(%arg0: i32, %arg1: i32, %arg2: memref<1x1x8x8xbf16, #tpu.memory_space<vmem>>, %arg3: memref<1x1x8x8xbf16, #tpu.memory_space<vmem>>, %arg4: memref<1x1x8x8xbf16, #tpu.memory_space<vmem>>, %arg5: memref<1x1x8x8xbf16, #tpu.memory_space<vmem>>) attributes {dimension_semantics = [#tpu.dimension_semantics<parallel>, #tpu.dimension_semantics<parallel>], iteration_bounds = array<i64: 2, 4>, scalar_prefetch = 0 : i64, scratch_operands = 0 : i64, tpu.core_type = #tpu.core_type<tc>, window_params = [{transform_indices = @transform_0, window_bounds = array<i64: 1, 1, 8, 8>}, {transform_indices = @transform_1, window_bounds = array<i64: 1, 1, 8, 8>}, {transform_indices = @transform_2, window_bounds = array<i64: 1, 1, 8, 8>}, {transform_indices = @transform_3, window_bounds = array<i64: 1, 1, 8, 8>}]} {
    %c0 = arith.constant 0 : index
    %c0_0 = arith.constant 0 : index
    %c0_1 = arith.constant 0 : index
    %c0_2 = arith.constant 0 : index
    %0 = vector.load %arg2[%c0, %c0_0, %c0_1, %c0_2] : memref<1x1x8x8xbf16, #tpu.memory_space<vmem>>, vector<1x1x8x8xbf16>
    %1 = vector.shape_cast %0 : vector<1x1x8x8xbf16> to vector<8x8xbf16>
    %cst = arith.constant 3.535160e-01 : bf16
    %2 = vector.broadcast %cst : bf16 to vector<8x8xbf16>
    %3 = arith.mulf %1, %2 : vector<8x8xbf16>
    %c0_3 = arith.constant 0 : index
    %c0_4 = arith.constant 0 : index
    %c0_5 = arith.constant 0 : index
    %c0_6 = arith.constant 0 : index
    %4 = vector.load %arg3[%c0_3, %c0_4, %c0_5, %c0_6] : memref<1x1x8x8xbf16, #tpu.memory_space<vmem>>, vector<1x1x8x8xbf16>
    %5 = vector.shape_cast %4 : vector<1x1x8x8xbf16> to vector<8x8xbf16>
    %c0_7 = arith.constant 0 : index
    %c0_8 = arith.constant 0 : index
    %c0_9 = arith.constant 0 : index
    %c0_10 = arith.constant 0 : index
    %6 = vector.load %arg4[%c0_7, %c0_8, %c0_9, %c0_10] : memref<1x1x8x8xbf16, #tpu.memory_space<vmem>>, vector<1x1x8x8xbf16>
    %7 = vector.shape_cast %6 : vector<1x1x8x8xbf16> to vector<8x8xbf16>
    %cst_11 = arith.constant dense<0.000000e+00> : vector<8x8xf32>
    %8 = tpu.matmul %3, %5, %cst_11 {dimension_numbers = #tpu.dot_dimension_numbers<[1], [1], [0], [0], [0, 0, 1, 0], [], []>} : vector<8x8xbf16>, vector<8x8xbf16>, vector<8x8xf32> -> vector<8x8xf32>
    %cst_12 = arith.constant dense<0xFF800000> : vector<8xf32>
    %9 = vector.multi_reduction <maximumf>, %8, %cst_12 [1] : vector<8x8xf32> to vector<8xf32>
    %10 = vector.shape_cast %9 : vector<8xf32> to vector<8x1xf32>
    %11 = vector.broadcast %10 : vector<8x1xf32> to vector<8x8xf32>
    %12 = arith.subf %8, %11 : vector<8x8xf32>
    %13 = math.exp %12 : vector<8x8xf32>
    %cst_13 = arith.constant dense<0.000000e+00> : vector<8xf32>
    %14 = vector.multi_reduction <add>, %13, %cst_13 [1] : vector<8x8xf32> to vector<8xf32>
    %15 = vector.shape_cast %14 : vector<8xf32> to vector<8x1xf32>
    %16 = tpu.reciprocal %15 {approx = true} : vector<8x1xf32> -> vector<8x1xf32>
    %17 = vector.broadcast %16 : vector<8x1xf32> to vector<8x8xf32>
    %18 = arith.mulf %13, %17 : vector<8x8xf32>
    %19 = arith.truncf %18 : vector<8x8xf32> to vector<8x8xbf16>
    %cst_14 = arith.constant dense<0.000000e+00> : vector<8x8xf32>
    %20 = tpu.matmul %19, %7, %cst_14 {dimension_numbers = #tpu.dot_dimension_numbers<[1], [0], [0], [1], [0, 0, 1, 1], [], []>} : vector<8x8xbf16>, vector<8x8xbf16>, vector<8x8xf32> -> vector<8x8xf32>
    %21 = arith.truncf %20 : vector<8x8xf32> to vector<8x8xbf16>
    %c0_15 = arith.constant 0 : index
    %c0_16 = arith.constant 0 : index
    %c0_17 = arith.constant 0 : index
    %c0_18 = arith.constant 0 : index
    %22 = vector.load %arg5[%c0_15, %c0_16, %c0_17, %c0_18] : memref<1x1x8x8xbf16, #tpu.memory_space<vmem>>, vector<1x1x8x8xbf16>
    %23 = vector.shape_cast %22 : vector<1x1x8x8xbf16> to vector<8x8xbf16>
    %24 = vector.shape_cast %21 : vector<8x8xbf16> to vector<1x1x8x8xbf16>
    tpu.vector_store %arg5[%c0_15, %c0_16, %c0_17, %c0_18], %24 {strides = array<i32>} : memref<1x1x8x8xbf16, #tpu.memory_space<vmem>>, vector<1x1x8x8xbf16>,
    return
  }
  func.func @transform_0(%arg0: i32, %arg1: i32) -> (i32, i32, i32, i32) {
    %c0_i32 = arith.constant 0 : i32
    %c0_i32_0 = arith.constant 0 : i32
    %c0_i32_1 = arith.constant 0 : i32
    return %arg0, %arg1, %c0_i32, %c0_i32_0 : i32, i32, i32, i32
  }
  func.func @transform_1(%arg0: i32, %arg1: i32) -> (i32, i32, i32, i32) {
    %c0_i32 = arith.constant 0 : i32
    %c0_i32_0 = arith.constant 0 : i32
    %c0_i32_1 = arith.constant 0 : i32
    return %arg0, %arg1, %c0_i32, %c0_i32_0 : i32, i32, i32, i32
  }
  func.func @transform_2(%arg0: i32, %arg1: i32) -> (i32, i32, i32, i32) {
    %c0_i32 = arith.constant 0 : i32
    %c0_i32_0 = arith.constant 0 : i32
    %c0_i32_1 = arith.constant 0 : i32
    return %arg0, %arg1, %c0_i32, %c0_i32_0 : i32, i32, i32, i32
  }
  func.func @transform_3(%arg0: i32, %arg1: i32) -> (i32, i32, i32, i32) {
    %c0_i32 = arith.constant 0 : i32
    %c0_i32_0 = arith.constant 0 : i32
    %c0_i32_1 = arith.constant 0 : i32
    return %arg0, %arg1, %c0_i32, %c0_i32_0 : i32, i32, i32, i32
  }
}

</mosaic_0001>

<llo_original>
// kernel: seq2seq_transformer_forward.57
$region0: #{seq2seq_transformer_forward.57}
  #allocation0 [shape = 'u32[]', space=smem, size = 0x4, offset = 0x4, fixed_abs, tag = 'smem constant byte address 0x4 - core index']
  #allocation1 [shape = 'u32[144,128]{1,0:T(1,128)}', space=vmem, size = 0x12000, scoped, tag = 'internal scratch']
  %s0 = inlined_call_operand.vmem [shape: bf16[2,4,8,8], index: 0, kind: input, shape index: {}]
  %s1 = inlined_call_operand.vmem [shape: bf16[2,4,8,8], index: 1, kind: input, shape index: {}]
  %s2 = inlined_call_operand.vmem [shape: bf16[2,4,8,8], index: 2, kind: input, shape index: {}]
  %s3 = inlined_call_operand.vmem [shape: f32[2,8,8], index: 3, kind: input, shape index: {}]
  %s4 = inlined_call_operand.vmem [shape: bf16[2,4,8,8], index: 4, kind: output, shape index: {}]
  %s5 = sld [smem:[#allocation0]]
  $region49: #{seq2seq_transformer_forward.57} parent=0
    _
  %s7 = ssub.s32 1, %s5
  %s8 = scalar_select 0, %s7, %s5
  loop: start=0, step=1, limit=10
  $region2: #{seq2seq_transformer_forward.57} parent=0 // loop_pre_header
    _
  $region3: #{seq2seq_transformer_forward.57} parent=0 // loop_header
    %s10 = sphi 0, %s14
    %p11 = scmp.ge.s32.totalorder %s10, 10
    %s17 = sphi 0, %s29
    %s18 = sphi 0, %s25
    %s19 = sphi 0, %s17
    %s20 = sphi 0, %s18
    %s21 = sphi 0, %s19
    %s22 = sphi 0, %s20
    %s34 = sphi 0, %s36
    %s37 = sphi 0, %s34
    %s38 = sphi 0, %s37
    %s54 = sphi 0, %s38
    %s62 = sphi 0, %s64
    %s65 = sphi 0, %s62
    %s66 = sphi 0, %s65
    %s82 = sphi 0, %s66
    %s90 = sphi 0, %s92
    %s93 = sphi 0, %s90
    %s94 = sphi 0, %s93
    %s110 = sphi 0, %s94
    %s116 = sphi 0, %s118
    %s119 = sphi 0, %s116
    %s120 = sphi 0, %s119
    %s136 = sphi 0, %s120
    %s144 = sphi 0, %s146
    %s147 = sphi 0, %s144
    %s148 = sphi 0, %s147
    %s164 = sphi 0, %s148
  $region4: #{seq2seq_transformer_forward.57} parent=0 // loop_header_branch
    %13 = sbr.rel (%p11) target = $region8
  $region5: #{seq2seq_transformer_forward.57} parent=0 // loop_body
    %s15 = ssub.s32 %s10, 1
    %s16 = ssub.s32 %s10, 2
    %s23 = sadd.s32 1, %s18
    %p24 = scmp.ge.s32.totalorder %s23, 4
    %s25 = scalar_select %p24, 0, %s23
    %s26 = sadd.s32 1, %s17
    %s27 = scalar_select %p24, %s26, %s17
    %p28 = scmp.ge.s32.totalorder %s27, 2
    %s29 = scalar_select %p28, 0, %s27
    %s30 = ssub.s32 %s17, %s29
    %s31 = ssub.s32 %s18, %s25
    %s32 = sor.u32 %s30, %s31
    %p33 = scmp.eq.s32.totalorder %s32, 0
    %s35 = sadd.s32 %s34, 1
    %s36 = scalar_select %p33, %s34, %s35
    %p39 = pneg %p33
    %p40 = scmp.eq.s32.totalorder %s10, 7
    %p41 = por %p39, %p40
    %p42 = scmp.ne.s32.totalorder %s34, %s37
    %p43 = scmp.eq.s32.totalorder %s10, 0
    %p44 = por %p42, %p43
    %p45 = scmp.ne.s32.totalorder %s34, %s37
    %p46 = scmp.eq.s32.totalorder %s15, 7
    %p47 = por %p45, %p46
    %p48 = scmp.ne.s32.totalorder %s37, %s38
    %p49 = scmp.eq.s32.totalorder %s15, 0
    %p50 = por %p48, %p49
    %p51 = scmp.ne.s32.totalorder %s37, %s38
    %p52 = scmp.eq.s32.totalorder %s16, 7
    %p53 = por %p51, %p52
    %p55 = scmp.ne.s32.totalorder %s38, %s54
    %p56 = scmp.eq.s32.totalorder %s16, 0
    %p57 = por %p55, %p56
    %s58 = ssub.s32 %s17, %s29
    %s59 = ssub.s32 %s18, %s25
    %s60 = sor.u32 %s58, %s59
    %p61 = scmp.eq.s32.totalorder %s60, 0
    %s63 = sadd.s32 %s62, 1
    %s64 = scalar_select %p61, %s62, %s63
    %p67 = pneg %p61
    %p68 = scmp.eq.s32.totalorder %s10, 7
    %p69 = por %p67, %p68
    %p70 = scmp.ne.s32.totalorder %s62, %s65
    %p71 = scmp.eq.s32.totalorder %s10, 0
    %p72 = por %p70, %p71
    %p73 = scmp.ne.s32.totalorder %s62, %s65
    %p74 = scmp.eq.s32.totalorder %s15, 7
    %p75 = por %p73, %p74
    %p76 = scmp.ne.s32.totalorder %s65, %s66
    %p77 = scmp.eq.s32.totalorder %s15, 0
    %p78 = por %p76, %p77
    %p79 = scmp.ne.s32.totalorder %s65, %s66
    %p80 = scmp.eq.s32.totalorder %s16, 7
    %p81 = por %p79, %p80
    %p83 = scmp.ne.s32.totalorder %s66, %s82
    %p84 = scmp.eq.s32.totalorder %s16, 0
    %p85 = por %p83, %p84
    %s86 = ssub.s32 %s17, %s29
    %s87 = ssub.s32 %s18, %s25
    %s88 = sor.u32 %s86, %s87
    %p89 = scmp.eq.s32.totalorder %s88, 0
    %s91 = sadd.s32 %s90, 1
    %s92 = scalar_select %p89, %s90, %s91
    %p95 = pneg %p89
    %p96 = scmp.eq.s32.totalorder %s10, 7
    %p97 = por %p95, %p96
    %p98 = scmp.ne.s32.totalorder %s90, %s93
    %p99 = scmp.eq.s32.totalorder %s10, 0
    %p100 = por %p98, %p99
    %p101 = scmp.ne.s32.totalorder %s90, %s93
    %p102 = scmp.eq.s32.totalorder %s15, 7
    %p103 = por %p101, %p102
    %p104 = scmp.ne.s32.totalorder %s93, %s94
    %p105 = scmp.eq.s32.totalorder %s15, 0
    %p106 = por %p104, %p105
    %p107 = scmp.ne.s32.totalorder %s93, %s94
    %p108 = scmp.eq.s32.totalorder %s16, 7
    %p109 = por %p107, %p108
    %p111 = scmp.ne.s32.totalorder %s94, %s110
    %p112 = scmp.eq.s32.totalorder %s16, 0
    %p113 = por %p111, %p112
    %s114 = ssub.s32 %s17, %s29
    %p115 = scmp.eq.s32.totalorder %s114, 0
    %s117 = sadd.s32 %s116, 1
    %s118 = scalar_select %p115, %s116, %s117
    %p121 = pneg %p115
    %p122 = scmp.eq.s32.totalorder %s10, 7
    %p123 = por %p121, %p122
    %p124 = scmp.ne.s32.totalorder %s116, %s119
    %p125 = scmp.eq.s32.totalorder %s10, 0
    %p126 = por %p124, %p125
    %p127 = scmp.ne.s32.totalorder %s116, %s119
    %p128 = scmp.eq.s32.totalorder %s15, 7
    %p129 = por %p127, %p128
    %p130 = scmp.ne.s32.totalorder %s119, %s120
    %p131 = scmp.eq.s32.totalorder %s15, 0
    %p132 = por %p130, %p131
    %p133 = scmp.ne.s32.totalorder %s119, %s120
    %p134 = scmp.eq.s32.totalorder %s16, 7
    %p135 = por %p133, %p134
    %p137 = scmp.ne.s32.totalorder %s120, %s136
    %p138 = scmp.eq.s32.totalorder %s16, 0
    %p139 = por %p137, %p138
    %s140 = ssub.s32 %s17, %s29
    %s141 = ssub.s32 %s18, %s25
    %s142 = sor.u32 %s140, %s141
    %p143 = scmp.eq.s32.totalorder %s142, 0
    %s145 = sadd.s32 %s144, 1
    %s146 = scalar_select %p143, %s144, %s145
    %p149 = pneg %p143
    %p150 = scmp.eq.s32.totalorder %s10, 7
    %p151 = por %p149, %p150
    %p152 = scmp.ne.s32.totalorder %s144, %s147
    %p153 = scmp.eq.s32.totalorder %s10, 0
    %p154 = por %p152, %p153
    %p155 = scmp.ne.s32.totalorder %s144, %s147
    %p156 = scmp.eq.s32.totalorder %s15, 7
    %p157 = por %p155, %p156
    %p158 = scmp.ne.s32.totalorder %s147, %s148
    %p159 = scmp.eq.s32.totalorder %s15, 0
    %p160 = por %p158, %p159
    %p161 = scmp.ne.s32.totalorder %s147, %s148
    %p162 = scmp.eq.s32.totalorder %s16, 7
    %p163 = por %p161, %p162
    %p165 = scmp.ne.s32.totalorder %s148, %s164
    %p166 = scmp.eq.s32.totalorder %s16, 0
    %p167 = por %p165, %p166
    %p168 = scmp.le.s32.totalorder 1, %s10
    %p169 = scmp.lt.s32.totalorder %s10, 9
    %p170 = pnand %p168, %p169
    %p171 = pneg %p170
    // Predicated region
    $region9: #{seq2seq_transformer_forward.57} parent=5 // pred_check
      _
    $region10: #{seq2seq_transformer_forward.57} parent=5 // pred_check_branch
      %173 = sbr.rel (%p170) target = $region12
    $region11: #{seq2seq_transformer_forward.57} parent=5 // pred_region
      %s174 = ssub.s32 %s10, 1
    $region12: #{seq2seq_transformer_forward.57} parent=5 // pred_fallthru
      _
    %p175 = scmp.lt.s32.totalorder %s10, 8
    // Predicated region
    $region13: #{seq2seq_transformer_forward.57} parent=5 // pred_check
      %p176 = pneg %p175
    $region14: #{seq2seq_transformer_forward.57} parent=5 // pred_check_branch
      %178 = sbr.rel (%p176) target = $region16
    $region15: #{seq2seq_transformer_forward.57} parent=5 // pred_region
      // Predicated region
      $region17: #{seq2seq_transformer_forward.57} parent=15 // pred_check
        %p179 = pneg %p44
      $region18: #{seq2seq_transformer_forward.57} parent=15 // pred_check_branch
        %181 = sbr.rel (%p179) target = $region20
      $region19: #{seq2seq_transformer_forward.57} parent=15 // pred_region
        %p182 = scmp.lt.s32.totalorder %s17, 1
        %s183 = scalar_select %p182, %s17, 1
        %p184 = scmp.lt.s32.totalorder %s18, 3
        %s185 = scalar_select %p184, %s18, 3
        %s186 = smul.addr %s183, 4
        %s187 = sadd.s32 %s185, %s186
        %s188 = smul.addr %s187, 4
        %s189 = scalar_lea.vmem %s0, %s188
      $region20: #{seq2seq_transformer_forward.57} parent=15 // pred_fallthru
        _
      // Predicated region
      $region21: #{seq2seq_transformer_forward.57} parent=15 // pred_check
        %p190 = pneg %p72
      $region22: #{seq2seq_transformer_forward.57} parent=15 // pred_check_branch
        %192 = sbr.rel (%p190) target = $region24
      $region23: #{seq2seq_transformer_forward.57} parent=15 // pred_region
        %p193 = scmp.lt.s32.totalorder %s17, 1
        %s194 = scalar_select %p193, %s17, 1
        %p195 = scmp.lt.s32.totalorder %s18, 3
        %s196 = scalar_select %p195, %s18, 3
        %s197 = smul.addr %s194, 4
        %s198 = sadd.s32 %s196, %s197
        %s199 = smul.addr %s198, 4
        %s200 = scalar_lea.vmem %s1, %s199
      $region24: #{seq2seq_transformer_forward.57} parent=15 // pred_fallthru
        _
      // Predicated region
      $region25: #{seq2seq_transformer_forward.57} parent=15 // pred_check
        %p201 = pneg %p100
      $region26: #{seq2seq_transformer_forward.57} parent=15 // pred_check_branch
        %203 = sbr.rel (%p201) target = $region28
      $region27: #{seq2seq_transformer_forward.57} parent=15 // pred_region
        %p204 = scmp.lt.s32.totalorder %s17, 1
        %s205 = scalar_select %p204, %s17, 1
        %p206 = scmp.lt.s32.totalorder %s18, 3
        %s207 = scalar_select %p206, %s18, 3
        %s208 = smul.addr %s205, 4
        %s209 = sadd.s32 %s207, %s208
        %s210 = smul.addr %s209, 4
        %s211 = scalar_lea.vmem %s2, %s210
      $region28: #{seq2seq_transformer_forward.57} parent=15 // pred_fallthru
        _
      // Predicated region
      $region29: #{seq2seq_transformer_forward.57} parent=15 // pred_check
        %p212 = pneg %p126
      $region30: #{seq2seq_transformer_forward.57} parent=15 // pred_check_branch
        %214 = sbr.rel (%p212) target = $region32
      $region31: #{seq2seq_transformer_forward.57} parent=15 // pred_region
        %p215 = scmp.lt.s32.totalorder %s17, 1
        %s216 = scalar_select %p215, %s17, 1
        %s217 = smul.addr %s216, 8
        %s218 = scalar_lea.vmem %s3, %s217
      $region32: #{seq2seq_transformer_forward.57} parent=15 // pred_fallthru
        _
    $region16: #{seq2seq_transformer_forward.57} parent=5 // pred_fallthru
      _
    %p219 = scmp.le.s32.totalorder 1, %s10
    %p220 = scmp.lt.s32.totalorder %s10, 9
    %p221 = pnand %p219, %p220
    %p222 = pneg %p221
    // Predicated region
    $region33: #{seq2seq_transformer_forward.57} parent=5 // pred_check
      _
    $region34: #{seq2seq_transformer_forward.57} parent=5 // pred_check_branch
      %224 = sbr.rel (%p221) target = $region36
    $region35: #{seq2seq_transformer_forward.57} parent=5 // pred_region
      %s225 = ssub.s32 %s10, 1
      %p226 = scmp.lt.s32.totalorder %s19, 1
      %s227 = scalar_select %p226, %s19, 1
      %p228 = scmp.lt.s32.totalorder %s20, 3
      %s229 = scalar_select %p228, %s20, 3
      %s230 = smul.addr %s227, 4
      %s231 = sadd.s32 %s229, %s230
      %s232 = smul.addr %s231, 4
      %s233 = scalar_lea.vmem %s0, %s232
      %p234 = pneg %p50
      %p235 = pneg %p47
      %p236 = scmp.lt.s32.totalorder %s19, 1
      %s237 = scalar_select %p236, %s19, 1
      %p238 = scmp.lt.s32.totalorder %s20, 3
      %s239 = scalar_select %p238, %s20, 3
      %s240 = smul.addr %s237, 4
      %s241 = sadd.s32 %s239, %s240
      %s242 = smul.addr %s241, 4
      %s243 = scalar_lea.vmem %s1, %s242
      %p244 = pneg %p78
      %p245 = pneg %p75
      %p246 = scmp.lt.s32.totalorder %s19, 1
      %s247 = scalar_select %p246, %s19, 1
      %p248 = scmp.lt.s32.totalorder %s20, 3
      %s249 = scalar_select %p248, %s20, 3
      %s250 = smul.addr %s247, 4
      %s251 = sadd.s32 %s249, %s250
      %s252 = smul.addr %s251, 4
      %s253 = scalar_lea.vmem %s2, %s252
      %p254 = pneg %p106
      %p255 = pneg %p103
      %p256 = scmp.lt.s32.totalorder %s19, 1
      %s257 = scalar_select %p256, %s19, 1
      %s258 = smul.addr %s257, 8
      %s259 = scalar_lea.vmem %s3, %s258
      %p260 = pneg %p132
      %p261 = pneg %p129
      %p262 = pneg %p160
      %p263 = pneg %p157
      %p264 = scmp.lt.s32.totalorder %s19, 1
      %s265 = scalar_select %p264, %s19, 1
      %p266 = scmp.lt.s32.totalorder %s20, 3
      %s267 = scalar_select %p266, %s20, 3
      %s268 = smul.addr %s265, 4
      %s269 = sadd.s32 %s267, %s268
      %s270 = smul.addr %s269, 4
      %s271 = scalar_lea.vmem %s4, %s270
      %p272 = scmp.lt.s32.totalorder %s19, 1
      %s273 = scalar_select %p272, %s19, 1
      %p274 = scmp.lt.s32.totalorder %s20, 3
      %s275 = scalar_select %p274, %s20, 3
      %s276 = smul.addr %s273, 4
      %s277 = sadd.s32 %s275, %s276
      %s278 = smul.addr %s277, 4
      %s279 = scalar_lea.vmem %s0, %s278
      %p280 = scmp.lt.s32.totalorder %s19, 1
      %s281 = scalar_select %p280, %s19, 1
      %p282 = scmp.lt.s32.totalorder %s20, 3
      %s283 = scalar_select %p282, %s20, 3
      %s284 = smul.addr %s281, 4
      %s285 = sadd.s32 %s283, %s284
      %s286 = smul.addr %s285, 4
      %s287 = scalar_lea.vmem %s1, %s286
      %p288 = scmp.lt.s32.totalorder %s19, 1
      %s289 = scalar_select %p288, %s19, 1
      %p290 = scmp.lt.s32.totalorder %s20, 3
      %s291 = scalar_select %p290, %s20, 3
      %s292 = smul.addr %s289, 4
      %s293 = sadd.s32 %s291, %s292
      %s294 = smul.addr %s293, 4
      %s295 = scalar_lea.vmem %s2, %s294
      %p296 = scmp.lt.s32.totalorder %s19, 1
      %s297 = scalar_select %p296, %s19, 1
      %s298 = smul.addr %s297, 8
      %s299 = scalar_lea.vmem %s3, %s298
      %p300 = scmp.lt.s32.totalorder %s19, 1
      %s301 = scalar_select %p300, %s19, 1
      %p302 = scmp.lt.s32.totalorder %s20, 3
      %s303 = scalar_select %p302, %s20, 3
      %s304 = smul.addr %s301, 4
      %s305 = sadd.s32 %s303, %s304
      %s306 = smul.addr %s305, 4
      %s307 = scalar_lea.vmem %s4, %s306
      %v310 = vld [vmem:[%s279] sm:$0xf]
      %v311 = vmul.bf16 %v310, 1052065461
      %v312 = vld [vmem:[%s287] sm:$0xf]
      %v313 = vld [vmem:[%s295] sm:$0xf]
      %v314 = vld [vmem:[%s299] sm:$0xff]
      %vm315 = vcmask 64512
      %v317 = vsel %vm315, %v311, 0
      %v320 = vsel %vm315, %v312, 0
      %322 = vmatprep.subr.bf16.mxu0 0
      %323 = vmatpush1.bf16.xpose.msra.mxu0 %v320
      %324 = vmatprep.subr.bf16.mxu0 0
      %325 = vmatpush1.bf16.xpose.msra.mxu0 0
      %326 = vmatprep.subr.bf16.mxu0 0
      %327 = vmatpush1.bf16.xpose.msra.mxu0 0
      %328 = vmatprep.subr.bf16.mxu0 0
      %329 = vmatpush1.bf16.xpose.msra.mxu0 0
      %330 = vmatprep.subr.bf16.mxu0 0
      %331 = vmatpush1.bf16.xpose.msra.mxu0 0
      %332 = vmatprep.subr.bf16.mxu0 0
      %333 = vmatpush1.bf16.xpose.msra.mxu0 0
      %334 = vmatprep.subr.bf16.mxu0 0
      %335 = vmatpush1.bf16.xpose.msra.mxu0 0
      %336 = vmatprep.subr.bf16.mxu0 0
      %337 = vmatpush1.bf16.xpose.msra.mxu0 0
      %338 = vmatprep.subr.bf16.mxu0 0
      %339 = vmatpush1.bf16.xpose.msra.mxu0 0
      %340 = vmatprep.subr.bf16.mxu0 0
      %341 = vmatpush1.bf16.xpose.msra.mxu0 0
      %342 = vmatprep.subr.bf16.mxu0 0
      %343 = vmatpush1.bf16.xpose.msra.mxu0 0
      %344 = vmatprep.subr.bf16.mxu0 0
      %345 = vmatpush1.bf16.xpose.msra.mxu0 0
      %346 = vmatprep.subr.bf16.mxu0 0
      %347 = vmatpush1.bf16.xpose.msra.mxu0 0
      %348 = vmatprep.subr.bf16.mxu0 0
      %349 = vmatpush1.bf16.xpose.msra.mxu0 0
      %350 = vmatprep.subr.bf16.mxu0 0
      %351 = vmatpush1.bf16.xpose.msra.mxu0 0
      %352 = vmatprep.subr.bf16.mxu0 0
      %353 = vmatpush1.bf16.xpose.msra.mxu0 0
      %354 = vmatprep.mubr.bf16.mxu0 0
      %355 = vmatmul.mubr.bf16.gmra.mrb[0].mxu0 %v317
      %v356 = vpop.f32.mrb[0].mxu0
      %v357 = vadd.f32 %v314, %v356
      %v358 = vpop.f32.mrb[0].mxu0
      %v359 = vpop.f32.mrb[0].mxu0
      %v360 = vpop.f32.mrb[0].mxu0
      %361 = vdwg.mxu0
      %v362 = vsel %vm315, %v357, -inf
      %363 = vmax.xlane.f32.xlu0 %v362
      %v364 = vpop.xlane.xlu0 %363
      %v365 = vsub.f32 %v357, %v364
      %v366 = vmul.f32 %v365, 1.442695
      %v367 = vpow.pop %v366
      %v368 = vsel %vm315, %v367, 0.0
      %369 = vadd.xlane.f32.xlu0 %v368
      %v370 = vpop.xlane.xlu0 %369
      %v371 = vrcp.pop %v370
      %v372 = vmul.f32 %v367, %v371
      %v373 = vpack.c.bf16 %v372, %v372
      %v375 = vsel %vm315, %v373, 0
      %vm377 = vcmask 1043456
      %v379 = vsel %vm377, %v313, 0
      %381 = vmatprep.subr.bf16.mxu0 0
      %382 = vmatpush1.bf16.msra.mxu0 %v379
      %383 = vmatprep.subr.bf16.mxu0 0
      %384 = vmatpush1.bf16.msra.mxu0 0
      %385 = vmatprep.subr.bf16.mxu0 0
      %386 = vmatpush1.bf16.msra.mxu0 0
      %387 = vmatprep.subr.bf16.mxu0 0
      %388 = vmatpush1.bf16.msra.mxu0 0
      %389 = vmatprep.subr.bf16.mxu0 0
      %390 = vmatpush1.bf16.msra.mxu0 0
      %391 = vmatprep.subr.bf16.mxu0 0
      %392 = vmatpush1.bf16.msra.mxu0 0
      %393 = vmatprep.subr.bf16.mxu0 0
      %394 = vmatpush1.bf16.msra.mxu0 0
      %395 = vmatprep.subr.bf16.mxu0 0
      %396 = vmatpush1.bf16.msra.mxu0 0
      %397 = vmatprep.subr.bf16.mxu0 0
      %398 = vmatpush1.bf16.msra.mxu0 0
      %399 = vmatprep.subr.bf16.mxu0 0
      %400 = vmatpush1.bf16.msra.mxu0 0
      %401 = vmatprep.subr.bf16.mxu0 0
      %402 = vmatpush1.bf16.msra.mxu0 0
      %403 = vmatprep.subr.bf16.mxu0 0
      %404 = vmatpush1.bf16.msra.mxu0 0
      %405 = vmatprep.subr.bf16.mxu0 0
      %406 = vmatpush1.bf16.msra.mxu0 0
      %407 = vmatprep.subr.bf16.mxu0 0
      %408 = vmatpush1.bf16.msra.mxu0 0
      %409 = vmatprep.subr.bf16.mxu0 0
      %410 = vmatpush1.bf16.msra.mxu0 0
      %411 = vmatprep.subr.bf16.mxu0 0
      %412 = vmatpush1.bf16.msra.mxu0 0
      %413 = vmatprep.mubr.bf16.mxu0 0
      %414 = vmatmul.mubr.bf16.gmra.mrb[0].mxu0 %v375
      %v415 = vpop.f32.mrb[0].mxu0
      %v416 = vadd.f32 0.0, %v415
      %v417 = vpop.f32.mrb[0].mxu0
      %v418 = vpop.f32.mrb[0].mxu0
      %v419 = vpop.f32.mrb[0].mxu0
      %420 = vdwg.mxu0
      %v421 = vpack.c.bf16 %v416, %v416
      %vm422 = vcmask 60416
      %423 = vst.msk [vmem:[%s307] sm:$0xf] %vm422, %v421
      %p424 = scmp.lt.s32.totalorder %s19, 1
      %s425 = scalar_select %p424, %s19, 1
      %p426 = scmp.lt.s32.totalorder %s20, 3
      %s427 = scalar_select %p426, %s20, 3
      %s428 = smul.addr %s425, 4
      %s429 = sadd.s32 %s427, %s428
      %s430 = smul.addr %s429, 4
      %s431 = scalar_lea.vmem %s4, %s430
      // Predicated region
      $region37: #{seq2seq_transformer_forward.57} parent=35 // pred_check
        %p432 = pneg %p157
      $region38: #{seq2seq_transformer_forward.57} parent=35 // pred_check_branch
        %434 = sbr.rel (%p432) target = $region40
      $region39: #{seq2seq_transformer_forward.57} parent=35 // pred_region
        _
      $region40: #{seq2seq_transformer_forward.57} parent=35 // pred_fallthru
        _
    $region36: #{seq2seq_transformer_forward.57} parent=5 // pred_fallthru
      _
    %p435 = scmp.le.s32.totalorder 2, %s10
    // Predicated region
    $region41: #{seq2seq_transformer_forward.57} parent=5 // pred_check
      %p436 = pneg %p435
    $region42: #{seq2seq_transformer_forward.57} parent=5 // pred_check_branch
      %438 = sbr.rel (%p436) target = $region44
    $region43: #{seq2seq_transformer_forward.57} parent=5 // pred_region
      %s439 = ssub.s32 %s10, 2
      // Predicated region
      $region45: #{seq2seq_transformer_forward.57} parent=43 // pred_check
        %p440 = pneg %p163
      $region46: #{seq2seq_transformer_forward.57} parent=43 // pred_check_branch
        %442 = sbr.rel (%p440) target = $region48
      $region47: #{seq2seq_transformer_forward.57} parent=43 // pred_region
        %p443 = scmp.lt.s32.totalorder %s21, 1
        %s444 = scalar_select %p443, %s21, 1
        %p445 = scmp.lt.s32.totalorder %s22, 3
        %s446 = scalar_select %p445, %s22, 3
        %s447 = smul.addr %s444, 4
        %s448 = sadd.s32 %s446, %s447
        %s449 = smul.addr %s448, 4
        %s450 = scalar_lea.vmem %s4, %s449
      $region48: #{seq2seq_transformer_forward.57} parent=43 // pred_fallthru
        _
    $region44: #{seq2seq_transformer_forward.57} parent=5 // pred_fallthru
      _
  $region6: #{seq2seq_transformer_forward.57} parent=0 // loop_footer
    %s14 = sadd.s32 1, %s10
  $region7: #{seq2seq_transformer_forward.57} parent=0 // loop_footer_branch
    %9 = sbr.rel target = $region3
  $region8: #{seq2seq_transformer_forward.57} parent=0 // loop_exit
    _

// kernel: seq2seq_transformer_forward.58
$region0: #{seq2seq_transformer_forward.58}
  #allocation0 [shape = 'u32[]', space=smem, size = 0x4, offset = 0x4, fixed_abs, tag = 'smem constant byte address 0x4 - core index']
  #allocation1 [shape = 'u32[144,128]{1,0:T(1,128)}', space=vmem, size = 0x12000, scoped, tag = 'internal scratch']
  #allocation2 [shape = 'f32[16,128]{1,0:T(8,128)}', space=vmem, size = 0x2000, scoped, tag = 'scratch operand']
  %s0 = inlined_call_operand.vmem [shape: bf16[16,128], index: 0, kind: input, shape index: {}]
  %s1 = inlined_call_operand.vmem [shape: bf16[128,128], index: 1, kind: input, shape index: {}]
  %s2 = inlined_call_operand.vmem [shape: f32[1,128], index: 2, kind: input, shape index: {}]
  %s3 = inlined_call_operand.vmem [shape: f32[16,128], index: 3, kind: output, shape index: {}]
  %s4 = sld [smem:[#allocation0]]
  $region30: #{seq2seq_transformer_forward.58} parent=0
    _
  %s6 = ssub.s32 1, %s4
  %s7 = scalar_select 0, %s6, %s4
  // Predicated region
  $region2: #{seq2seq_transformer_forward.58} parent=0 // pred_check
    _
  $region3: #{seq2seq_transformer_forward.58} parent=0 // pred_check_branch
    %9 = sbr.rel (0) target = $region5
  $region4: #{seq2seq_transformer_forward.58} parent=0 // pred_region
    _
  $region5: #{seq2seq_transformer_forward.58} parent=0 // pred_fallthru
    _
  // Predicated region
  $region6: #{seq2seq_transformer_forward.58} parent=0 // pred_check
    _
  $region7: #{seq2seq_transformer_forward.58} parent=0 // pred_check_branch
    %11 = sbr.rel (0) target = $region9
  $region8: #{seq2seq_transformer_forward.58} parent=0 // pred_region
    _
  $region9: #{seq2seq_transformer_forward.58} parent=0 // pred_fallthru
    _
  // Predicated region
  $region10: #{seq2seq_transformer_forward.58} parent=0 // pred_check
    _
  $region11: #{seq2seq_transformer_forward.58} parent=0 // pred_check_branch
    %13 = sbr.rel (0) target = $region13
  $region12: #{seq2seq_transformer_forward.58} parent=0 // pred_region
    _
  $region13: #{seq2seq_transformer_forward.58} parent=0 // pred_fallthru
    _
  %p15 = scmp.eq.s32.totalorder 0, 0
  // Predicated region
  $region14: #{seq2seq_transformer_forward.58} parent=0 // pred_check
    %p16 = pneg %p15
  $region15: #{seq2seq_transformer_forward.58} parent=0 // pred_check_branch
    %18 = sbr.rel (%p16) target = $region17
  $region16: #{seq2seq_transformer_forward.58} parent=0 // pred_region
    %19 = vst [vmem:[#allocation2] sm:$0xff] 0.0
    %20 = vst [vmem:[#allocation2 + $0x8] sm:$0xff] 0.0
  $region17: #{seq2seq_transformer_forward.58} parent=0 // pred_fallthru
    _
  %v21 = vld [vmem:[#allocation2] sm:$0xff]
  %v22 = vld [vmem:[#allocation2 + $0x8] sm:$0xff]
  %v23 = vld [vmem:[%s0] sm:$0xf]
  %v24 = vld [vmem:[%s0 + $0x4] sm:$0xf]
  %v25 = vld [vmem:[%s1] sm:$0xf]
  %v26 = vld [vmem:[%s1 + $0x4] sm:$0xf]
  %v27 = vld [vmem:[%s1 + $0x8] sm:$0xf]
  %v28 = vld [vmem:[%s1 + $0xc] sm:$0xf]
  %v29 = vld [vmem:[%s1 + $0x10] sm:$0xf]
  %v30 = vld [vmem:[%s1 + $0x14] sm:$0xf]
  %v31 = vld [vmem:[%s1 + $0x18] sm:$0xf]
  %v32 = vld [vmem:[%s1 + $0x1c] sm:$0xf]
  %v33 = vld [vmem:[%s1 + $0x20] sm:$0xf]
  %v34 = vld [vmem:[%s1 + $0x24] sm:$0xf]
  %v35 = vld [vmem:[%s1 + $0x28] sm:$0xf]
  %v36 = vld [vmem:[%s1 + $0x2c] sm:$0xf]
  %v37 = vld [vmem:[%s1 + $0x30] sm:$0xf]
  %v38 = vld [vmem:[%s1 + $0x34] sm:$0xf]
  %v39 = vld [vmem:[%s1 + $0x38] sm:$0xf]
  %v40 = vld [vmem:[%s1 + $0x3c] sm:$0xf]
  %v43 = vunpack.c.l.b16 %v23
  %v44 = vunpack.c.l.b16 %v24
  %v45 = vpack.c.b16 %v44, %v43
  %v63 = vunpack.c.l.b16 %v25
  %v64 = vunpack.c.l.b16 %v26
  %v65 = vunpack.c.l.b16 %v27
  %v66 = vunpack.c.l.b16 %v28
  %v67 = vunpack.c.l.b16 %v29
  %v68 = vunpack.c.l.b16 %v30
  %v69 = vunpack.c.l.b16 %v31
  %v70 = vunpack.c.l.b16 %v32
  %v71 = vunpack.c.l.b16 %v33
  %v72 = vunpack.c.l.b16 %v34
  %v73 = vunpack.c.l.b16 %v35
  %v74 = vunpack.c.l.b16 %v36
  %v75 = vunpack.c.l.b16 %v37
  %v76 = vunpack.c.l.b16 %v38
  %v77 = vunpack.c.l.b16 %v39
  %v78 = vunpack.c.l.b16 %v40
  %v79 = vpack.c.b16 %v64, %v63
  %v80 = vpack.c.b16 %v66, %v65
  %v81 = vpack.c.b16 %v68, %v67
  %v82 = vpack.c.b16 %v70, %v69
  %v83 = vpack.c.b16 %v72, %v71
  %v84 = vpack.c.b16 %v74, %v73
  %v85 = vpack.c.b16 %v76, %v75
  %v86 = vpack.c.b16 %v78, %v77
  %95 = vmatprep.subr.bf16.mxu0 0
  %96 = vmatpush1.bf16.msra.mxu0 %v79
  %97 = vmatprep.subr.bf16.mxu0 0
  %98 = vmatpush1.bf16.msra.mxu0 %v80
  %99 = vmatprep.subr.bf16.mxu0 0
  %100 = vmatpush1.bf16.msra.mxu0 %v81
  %101 = vmatprep.subr.bf16.mxu0 0
  %102 = vmatpush1.bf16.msra.mxu0 %v82
  %103 = vmatprep.subr.bf16.mxu0 0
  %104 = vmatpush1.bf16.msra.mxu0 %v83
  %105 = vmatprep.subr.bf16.mxu0 0
  %106 = vmatpush1.bf16.msra.mxu0 %v84
  %107 = vmatprep.subr.bf16.mxu0 0
  %108 = vmatpush1.bf16.msra.mxu0 %v85
  %109 = vmatprep.subr.bf16.mxu0 0
  %110 = vmatpush1.bf16.msra.mxu0 %v86
  %111 = vmatprep.subr.bf16.mxu0 0
  %112 = vmatpush1.bf16.msra.mxu0 0
  %113 = vmatprep.subr.bf16.mxu0 0
  %114 = vmatpush1.bf16.msra.mxu0 0
  %115 = vmatprep.subr.bf16.mxu0 0
  %116 = vmatpush1.bf16.msra.mxu0 0
  %117 = vmatprep.subr.bf16.mxu0 0
  %118 = vmatpush1.bf16.msra.mxu0 0
  %119 = vmatprep.subr.bf16.mxu0 0
  %120 = vmatpush1.bf16.msra.mxu0 0
  %121 = vmatprep.subr.bf16.mxu0 0
  %122 = vmatpush1.bf16.msra.mxu0 0
  %123 = vmatprep.subr.bf16.mxu0 0
  %124 = vmatpush1.bf16.msra.mxu0 0
  %125 = vmatprep.subr.bf16.mxu0 0
  %126 = vmatpush1.bf16.msra.mxu0 0
  %127 = vmatprep.mubr.bf16.mxu0 0
  %128 = vmatmul.mubr.bf16.gmra.mrb[0].mxu0 %v45
  %v129 = vpop.f32.mrb[0].mxu0
  %v130 = vadd.f32 0.0, %v129
  %v131 = vpop.f32.mrb[0].mxu0
  %v132 = vpop.f32.mrb[0].mxu0
  %v133 = vadd.f32 0.0, %v132
  %v134 = vpop.f32.mrb[0].mxu0
  %135 = vdwg.mxu0
  %v136 = vadd.f32 %v21, %v130
  %v137 = vadd.f32 %v22, %v133
  %138 = vst [vmem:[#allocation2] sm:$0xff] %v136
  %139 = vst [vmem:[#allocation2 + $0x8] sm:$0xff] %v137
  // Predicated region
  $region18: #{seq2seq_transformer_forward.58} parent=0 // pred_check
    %p140 = pneg %p15
  $region19: #{seq2seq_transformer_forward.58} parent=0 // pred_check_branch
    %142 = sbr.rel (%p140) target = $region21
  $region20: #{seq2seq_transformer_forward.58} parent=0 // pred_region
    %v143 = vld [vmem:[#allocation2] sm:$0xff]
    %v144 = vld [vmem:[#allocation2 + $0x8] sm:$0xff]
    %v145 = vld [vmem:[%s2] sm:$0x1]
    %v147 = vlaneseq
    %v148 = vshrl.u32 %v147, 7
    %v149 = vsub.s32 0, %v148
    %v150 = vrot.slane %v145, %v149
    %v152 = vadd.f32 %v143, %v150
    %v153 = vadd.f32 %v144, %v150
    %154 = vst [vmem:[%s3] sm:$0xff] %v152
    %155 = vst [vmem:[%s3 + $0x8] sm:$0xff] %v153
  $region21: #{seq2seq_transformer_forward.58} parent=0 // pred_fallthru
    _
  // Predicated region
  $region22: #{seq2seq_transformer_forward.58} parent=0 // pred_check
    _
  $region23: #{seq2seq_transformer_forward.58} parent=0 // pred_check_branch
    %157 = sbr.rel (0) target = $region25
  $region24: #{seq2seq_transformer_forward.58} parent=0 // pred_region
    _
  $region25: #{seq2seq_transformer_forward.58} parent=0 // pred_fallthru
    _
  // Predicated region
  $region26: #{seq2seq_transformer_forward.58} parent=0 // pred_check
    _
  $region27: #{seq2seq_transformer_forward.58} parent=0 // pred_check_branch
    %159 = sbr.rel (0) target = $region29
  $region28: #{seq2seq_transformer_forward.58} parent=0 // pred_region
    _
  $region29: #{seq2seq_transformer_forward.58} parent=0 // pred_fallthru
    _

// kernel: seq2seq_transformer_forward.56
$region0: #{seq2seq_transformer_forward.56}
  #allocation0 [shape = 'u32[]', space=smem, size = 0x4, offset = 0x4, fixed_abs, tag = 'smem constant byte address 0x4 - core index']
  #allocation1 [shape = 'u32[144,128]{1,0:T(1,128)}', space=vmem, size = 0x12000, scoped, tag = 'internal scratch']
  #allocation2 [shape = 'f32[16,128]{1,0:T(8,128)}', space=vmem, size = 0x2000, scoped, tag = 'scratch operand']
  %s0 = inlined_call_operand.vmem [shape: bf16[16,128], index: 0, kind: input, shape index: {}]
  %s1 = inlined_call_operand.vmem [shape: bf16[128,128], index: 1, kind: input, shape index: {}]
  %s2 = inlined_call_operand.vmem [shape: f32[1,128], index: 2, kind: input, shape index: {}]
  %s3 = inlined_call_operand.vmem [shape: bf16[16,128], index: 3, kind: output, shape index: {}]
  %s4 = sld [smem:[#allocation0]]
  $region30: #{seq2seq_transformer_forward.56} parent=0
    _
  %s6 = ssub.s32 1, %s4
  %s7 = scalar_select 0, %s6, %s4
  // Predicated region
  $region2: #{seq2seq_transformer_forward.56} parent=0 // pred_check
    _
  $region3: #{seq2seq_transformer_forward.56} parent=0 // pred_check_branch
    %9 = sbr.rel (0) target = $region5
  $region4: #{seq2seq_transformer_forward.56} parent=0 // pred_region
    _
  $region5: #{seq2seq_transformer_forward.56} parent=0 // pred_fallthru
    _
  // Predicated region
  $region6: #{seq2seq_transformer_forward.56} parent=0 // pred_check
    _
  $region7: #{seq2seq_transformer_forward.56} parent=0 // pred_check_branch
    %11 = sbr.rel (0) target = $region9
  $region8: #{seq2seq_transformer_forward.56} parent=0 // pred_region
    _
  $region9: #{seq2seq_transformer_forward.56} parent=0 // pred_fallthru
    _
  // Predicated region
  $region10: #{seq2seq_transformer_forward.56} parent=0 // pred_check
    _
  $region11: #{seq2seq_transformer_forward.56} parent=0 // pred_check_branch
    %13 = sbr.rel (0) target = $region13
  $region12: #{seq2seq_transformer_forward.56} parent=0 // pred_region
    _
  $region13: #{seq2seq_transformer_forward.56} parent=0 // pred_fallthru
    _
  %p15 = scmp.eq.s32.totalorder 0, 0
  // Predicated region
  $region14: #{seq2seq_transformer_forward.56} parent=0 // pred_check
    %p16 = pneg %p15
  $region15: #{seq2seq_transformer_forward.56} parent=0 // pred_check_branch
    %18 = sbr.rel (%p16) target = $region17
  $region16: #{seq2seq_transformer_forward.56} parent=0 // pred_region
    %19 = vst [vmem:[#allocation2] sm:$0xff] 0.0
    %20 = vst [vmem:[#allocation2 + $0x8] sm:$0xff] 0.0
  $region17: #{seq2seq_transformer_forward.56} parent=0 // pred_fallthru
    _
  %v21 = vld [vmem:[#allocation2] sm:$0xff]
  %v22 = vld [vmem:[#allocation2 + $0x8] sm:$0xff]
  %v23 = vld [vmem:[%s0] sm:$0xf]
  %v24 = vld [vmem:[%s0 + $0x4] sm:$0xf]
  %v25 = vld [vmem:[%s1] sm:$0xf]
  %v26 = vld [vmem:[%s1 + $0x4] sm:$0xf]
  %v27 = vld [vmem:[%s1 + $0x8] sm:$0xf]
  %v28 = vld [vmem:[%s1 + $0xc] sm:$0xf]
  %v29 = vld [vmem:[%s1 + $0x10] sm:$0xf]
  %v30 = vld [vmem:[%s1 + $0x14] sm:$0xf]
  %v31 = vld [vmem:[%s1 + $0x18] sm:$0xf]
  %v32 = vld [vmem:[%s1 + $0x1c] sm:$0xf]
  %v33 = vld [vmem:[%s1 + $0x20] sm:$0xf]
  %v34 = vld [vmem:[%s1 + $0x24] sm:$0xf]
  %v35 = vld [vmem:[%s1 + $0x28] sm:$0xf]
  %v36 = vld [vmem:[%s1 + $0x2c] sm:$0xf]
  %v37 = vld [vmem:[%s1 + $0x30] sm:$0xf]
  %v38 = vld [vmem:[%s1 + $0x34] sm:$0xf]
  %v39 = vld [vmem:[%s1 + $0x38] sm:$0xf]
  %v40 = vld [vmem:[%s1 + $0x3c] sm:$0xf]
  %v43 = vunpack.c.l.b16 %v23
  %v44 = vunpack.c.l.b16 %v24
  %v45 = vpack.c.b16 %v44, %v43
  %v63 = vunpack.c.l.b16 %v25
  %v64 = vunpack.c.l.b16 %v26
  %v65 = vunpack.c.l.b16 %v27
  %v66 = vunpack.c.l.b16 %v28
  %v67 = vunpack.c.l.b16 %v29
  %v68 = vunpack.c.l.b16 %v30
  %v69 = vunpack.c.l.b16 %v31
  %v70 = vunpack.c.l.b16 %v32
  %v71 = vunpack.c.l.b16 %v33
  %v72 = vunpack.c.l.b16 %v34
  %v73 = vunpack.c.l.b16 %v35
  %v74 = vunpack.c.l.b16 %v36
  %v75 = vunpack.c.l.b16 %v37
  %v76 = vunpack.c.l.b16 %v38
  %v77 = vunpack.c.l.b16 %v39
  %v78 = vunpack.c.l.b16 %v40
  %v79 = vpack.c.b16 %v64, %v63
  %v80 = vpack.c.b16 %v66, %v65
  %v81 = vpack.c.b16 %v68, %v67
  %v82 = vpack.c.b16 %v70, %v69
  %v83 = vpack.c.b16 %v72, %v71
  %v84 = vpack.c.b16 %v74, %v73
  %v85 = vpack.c.b16 %v76, %v75
  %v86 = vpack.c.b16 %v78, %v77
  %95 = vmatprep.subr.bf16.mxu0 0
  %96 = vmatpush1.bf16.msra.mxu0 %v79
  %97 = vmatprep.subr.bf16.mxu0 0
  %98 = vmatpush1.bf16.msra.mxu0 %v80
  %99 = vmatprep.subr.bf16.mxu0 0
  %100 = vmatpush1.bf16.msra.mxu0 %v81
  %101 = vmatprep.subr.bf16.mxu0 0
  %102 = vmatpush1.bf16.msra.mxu0 %v82
  %103 = vmatprep.subr.bf16.mxu0 0
  %104 = vmatpush1.bf16.msra.mxu0 %v83
  %105 = vmatprep.subr.bf16.mxu0 0
  %106 = vmatpush1.bf16.msra.mxu0 %v84
  %107 = vmatprep.subr.bf16.mxu0 0
  %108 = vmatpush1.bf16.msra.mxu0 %v85
  %109 = vmatprep.subr.bf16.mxu0 0
  %110 = vmatpush1.bf16.msra.mxu0 %v86
  %111 = vmatprep.subr.bf16.mxu0 0
  %112 = vmatpush1.bf16.msra.mxu0 0
  %113 = vmatprep.subr.bf16.mxu0 0
  %114 = vmatpush1.bf16.msra.mxu0 0
  %115 = vmatprep.subr.bf16.mxu0 0
  %116 = vmatpush1.bf16.msra.mxu0 0
  %117 = vmatprep.subr.bf16.mxu0 0
  %118 = vmatpush1.bf16.msra.mxu0 0
  %119 = vmatprep.subr.bf16.mxu0 0
  %120 = vmatpush1.bf16.msra.mxu0 0
  %121 = vmatprep.subr.bf16.mxu0 0
  %122 = vmatpush1.bf16.msra.mxu0 0
  %123 = vmatprep.subr.bf16.mxu0 0
  %124 = vmatpush1.bf16.msra.mxu0 0
  %125 = vmatprep.subr.bf16.mxu0 0
  %126 = vmatpush1.bf16.msra.mxu0 0
  %127 = vmatprep.mubr.bf16.mxu0 0
  %128 = vmatmul.mubr.bf16.gmra.mrb[0].mxu0 %v45
  %v129 = vpop.f32.mrb[0].mxu0
  %v130 = vadd.f32 0.0, %v129
  %v131 = vpop.f32.mrb[0].mxu0
  %v132 = vpop.f32.mrb[0].mxu0
  %v133 = vadd.f32 0.0, %v132
  %v134 = vpop.f32.mrb[0].mxu0
  %135 = vdwg.mxu0
  %v136 = vadd.f32 %v21, %v130
  %v137 = vadd.f32 %v22, %v133
  %138 = vst [vmem:[#allocation2] sm:$0xff] %v136
  %139 = vst [vmem:[#allocation2 + $0x8] sm:$0xff] %v137
  // Predicated region
  $region18: #{seq2seq_transformer_forward.56} parent=0 // pred_check
    %p140 = pneg %p15
  $region19: #{seq2seq_transformer_forward.56} parent=0 // pred_check_branch
    %142 = sbr.rel (%p140) target = $region21
  $region20: #{seq2seq_transformer_forward.56} parent=0 // pred_region
    %v143 = vld [vmem:[#allocation2] sm:$0xff]
    %v144 = vld [vmem:[#allocation2 + $0x8] sm:$0xff]
    %v145 = vld [vmem:[%s2] sm:$0x1]
    %v147 = vlaneseq
    %v148 = vshrl.u32 %v147, 7
    %v149 = vsub.s32 0, %v148
    %v150 = vrot.slane %v145, %v149
    %v152 = vadd.f32 %v143, %v150
    %v153 = vadd.f32 %v144, %v150
    %v154 = vpack.c.bf16 %v153, %v152
    %v156 = vunpack.c.l.b16 %v154
    %v157 = vunpack.c.h.b16 %v154
    %v158 = vpack.c.b16 %v156, %v156
    %v159 = vpack.c.b16 %v157, %v157
    %162 = vst [vmem:[%s3] sm:$0xf] %v158
    %163 = vst [vmem:[%s3 + $0x4] sm:$0xf] %v159
  $region21: #{seq2seq_transformer_forward.56} parent=0 // pred_fallthru
    _
  // Predicated region
  $region22: #{seq2seq_transformer_forward.56} parent=0 // pred_check
    _
  $region23: #{seq2seq_transformer_forward.56} parent=0 // pred_check_branch
    %165 = sbr.rel (0) target = $region25
  $region24: #{seq2seq_transformer_forward.56} parent=0 // pred_region
    _
  $region25: #{seq2seq_transformer_forward.56} parent=0 // pred_fallthru
    _
  // Predicated region
  $region26: #{seq2seq_transformer_forward.56} parent=0 // pred_check
    _
  $region27: #{seq2seq_transformer_forward.56} parent=0 // pred_check_branch
    %167 = sbr.rel (0) target = $region29
  $region28: #{seq2seq_transformer_forward.56} parent=0 // pred_region
    _
  $region29: #{seq2seq_transformer_forward.56} parent=0 // pred_fallthru
    _

// kernel: seq2seq_transformer_forward.59
$region0: #{seq2seq_transformer_forward.59}
  #allocation0 [shape = 'u32[]', space=smem, size = 0x4, offset = 0x4, fixed_abs, tag = 'smem constant byte address 0x4 - core index']
  #allocation1 [shape = 'u32[144,128]{1,0:T(1,128)}', space=vmem, size = 0x12000, scoped, tag = 'internal scratch']
  %s0 = inlined_call_operand.vmem [shape: f32[16,32], index: 0, kind: input, shape index: {}]
  %s1 = inlined_call_operand.vmem [shape: f32[16,32], index: 1, kind: input, shape index: {}]
  %s2 = inlined_call_operand.vmem [shape: f32[1,32], index: 2, kind: input, shape index: {}]
  %s3 = inlined_call_operand.vmem [shape: f32[1,32], index: 3, kind: input, shape index: {}]
  %s4 = inlined_call_operand.vmem [shape: f32[16,32], index: 4, kind: output, shape index: {}]
  %s5 = sld [smem:[#allocation0]]
  $region26: #{seq2seq_transformer_forward.59} parent=0
    _
  %s7 = ssub.s32 1, %s5
  %s8 = scalar_select 0, %s7, %s5
  // Predicated region
  $region2: #{seq2seq_transformer_forward.59} parent=0 // pred_check
    _
  $region3: #{seq2seq_transformer_forward.59} parent=0 // pred_check_branch
    %10 = sbr.rel (0) target = $region5
  $region4: #{seq2seq_transformer_forward.59} parent=0 // pred_region
    _
  $region5: #{seq2seq_transformer_forward.59} parent=0 // pred_fallthru
    _
  // Predicated region
  $region6: #{seq2seq_transformer_forward.59} parent=0 // pred_check
    _
  $region7: #{seq2seq_transformer_forward.59} parent=0 // pred_check_branch
    %12 = sbr.rel (0) target = $region9
  $region8: #{seq2seq_transformer_forward.59} parent=0 // pred_region
    _
  $region9: #{seq2seq_transformer_forward.59} parent=0 // pred_fallthru
    _
  // Predicated region
  $region10: #{seq2seq_transformer_forward.59} parent=0 // pred_check
    _
  $region11: #{seq2seq_transformer_forward.59} parent=0 // pred_check_branch
    %14 = sbr.rel (0) target = $region13
  $region12: #{seq2seq_transformer_forward.59} parent=0 // pred_region
    _
  $region13: #{seq2seq_transformer_forward.59} parent=0 // pred_fallthru
    _
  // Predicated region
  $region14: #{seq2seq_transformer_forward.59} parent=0 // pred_check
    _
  $region15: #{seq2seq_transformer_forward.59} parent=0 // pred_check_branch
    %16 = sbr.rel (0) target = $region17
  $region16: #{seq2seq_transformer_forward.59} parent=0 // pred_region
    _
  $region17: #{seq2seq_transformer_forward.59} parent=0 // pred_fallthru
    _
  %v17 = vld [vmem:[%s0] sm:$0xff]
  %v18 = vld [vmem:[%s0 + $0x8] sm:$0xff]
  %v19 = vld [vmem:[%s1] sm:$0xff]
  %v20 = vld [vmem:[%s1 + $0x8] sm:$0xff]
  %v21 = vadd.f32 %v17, %v19
  %v22 = vadd.f32 %v18, %v20
  %vm23 = vcmask 261120
  %v24 = vsel %vm23, %v21, 0.0
  %25 = vadd.xlane.f32.xlu0 %v24
  %v26 = vpop.xlane.xlu0 %25
  %v27 = vsel %vm23, %v22, 0.0
  %28 = vadd.xlane.f32.xlu0 %v27
  %v29 = vpop.xlane.xlu0 %28
  %v30 = vrcp.pop 32.0
  %v31 = vmul.f32 %v26, %v30
  %v32 = vmul.f32 %v29, %v30
  %v33 = vsub.f32 %v21, %v31
  %v34 = vsub.f32 %v22, %v32
  %v35 = vmul.f32 %v33, %v33
  %v36 = vmul.f32 %v34, %v34
  %v37 = vsel %vm23, %v35, 0.0
  %38 = vadd.xlane.f32.xlu0 %v37
  %v39 = vpop.xlane.xlu0 %38
  %v40 = vsel %vm23, %v36, 0.0
  %41 = vadd.xlane.f32.xlu0 %v40
  %v42 = vpop.xlane.xlu0 %41
  %v43 = vmul.f32 %v39, %v30
  %v44 = vmul.f32 %v42, %v30
  %v45 = vadd.f32 %v43, 1e-05
  %v46 = vadd.f32 %v44, 1e-05
  %v47 = vrsqrt.pop %v45
  %v48 = vrsqrt.pop %v46
  %v49 = vmul.f32 %v33, %v47
  %v50 = vmul.f32 %v34, %v48
  %v51 = vld [vmem:[%s2] sm:$0x1]
  %v53 = vlaneseq
  %v54 = vshrl.u32 %v53, 7
  %v55 = vsub.s32 0, %v54
  %v56 = vrot.slane %v51, %v55
  %v58 = vmul.f32 %v49, %v56
  %v59 = vmul.f32 %v50, %v56
  %v60 = vld [vmem:[%s3] sm:$0x1]
  %v62 = vlaneseq
  %v63 = vshrl.u32 %v62, 7
  %v64 = vsub.s32 0, %v63
  %v65 = vrot.slane %v60, %v64
  %v67 = vadd.f32 %v58, %v65
  %v68 = vadd.f32 %v59, %v65
  %69 = vst.msk [vmem:[%s4] sm:$0xff] %vm23, %v67
  %70 = vst.msk [vmem:[%s4 + $0x8] sm:$0xff] %vm23, %v68
  // Predicated region
  $region18: #{seq2seq_transformer_forward.59} parent=0 // pred_check
    _
  $region19: #{seq2seq_transformer_forward.59} parent=0 // pred_check_branch
    %72 = sbr.rel (0) target = $region21
  $region20: #{seq2seq_transformer_forward.59} parent=0 // pred_region
    _
  $region21: #{seq2seq_transformer_forward.59} parent=0 // pred_fallthru
    _
  // Predicated region
  $region22: #{seq2seq_transformer_forward.59} parent=0 // pred_check
    _
  $region23: #{seq2seq_transformer_forward.59} parent=0 // pred_check_branch
    %74 = sbr.rel (0) target = $region25
  $region24: #{seq2seq_transformer_forward.59} parent=0 // pred_region
    _
  $region25: #{seq2seq_transformer_forward.59} parent=0 // pred_fallthru
    _

// kernel: seq2seq_transformer_forward.42
$region0: #{seq2seq_transformer_forward.42}
  #allocation0 [shape = 'u32[]', space=smem, size = 0x4, offset = 0x4, fixed_abs, tag = 'smem constant byte address 0x4 - core index']
  #allocation1 [shape = 'u32[144,128]{1,0:T(1,128)}', space=vmem, size = 0x12000, scoped, tag = 'internal scratch']
  %s0 = inlined_call_operand.vmem [shape: bf16[2,4,8,8], index: 0, kind: input, shape index: {}]
  %s1 = inlined_call_operand.vmem [shape: bf16[2,4,8,8], index: 1, kind: input, shape index: {}]
  %s2 = inlined_call_operand.vmem [shape: bf16[2,4,8,8], index: 2, kind: input, shape index: {}]
  %s3 = inlined_call_operand.vmem [shape: f32[2,1,8], index: 3, kind: input, shape index: {}]
  %s4 = inlined_call_operand.vmem [shape: bf16[2,4,8,8], index: 4, kind: output, shape index: {}]
  %s5 = sld [smem:[#allocation0]]
  $region49: #{seq2seq_transformer_forward.42} parent=0
    _
  %s7 = ssub.s32 1, %s5
  %s8 = scalar_select 0, %s7, %s5
  loop: start=0, step=1, limit=10
  $region2: #{seq2seq_transformer_forward.42} parent=0 // loop_pre_header
    _
  $region3: #{seq2seq_transformer_forward.42} parent=0 // loop_header
    %s10 = sphi 0, %s14
    %p11 = scmp.ge.s32.totalorder %s10, 10
    %s17 = sphi 0, %s29
    %s18 = sphi 0, %s25
    %s19 = sphi 0, %s17
    %s20 = sphi 0, %s18
    %s21 = sphi 0, %s19
    %s22 = sphi 0, %s20
    %s34 = sphi 0, %s36
    %s37 = sphi 0, %s34
    %s38 = sphi 0, %s37
    %s54 = sphi 0, %s38
    %s62 = sphi 0, %s64
    %s65 = sphi 0, %s62
    %s66 = sphi 0, %s65
    %s82 = sphi 0, %s66
    %s90 = sphi 0, %s92
    %s93 = sphi 0, %s90
    %s94 = sphi 0, %s93
    %s110 = sphi 0, %s94
    %s116 = sphi 0, %s118
    %s119 = sphi 0, %s116
    %s120 = sphi 0, %s119
    %s136 = sphi 0, %s120
    %s144 = sphi 0, %s146
    %s147 = sphi 0, %s144
    %s148 = sphi 0, %s147
    %s164 = sphi 0, %s148
  $region4: #{seq2seq_transformer_forward.42} parent=0 // loop_header_branch
    %13 = sbr.rel (%p11) target = $region8
  $region5: #{seq2seq_transformer_forward.42} parent=0 // loop_body
    %s15 = ssub.s32 %s10, 1
    %s16 = ssub.s32 %s10, 2
    %s23 = sadd.s32 1, %s18
    %p24 = scmp.ge.s32.totalorder %s23, 4
    %s25 = scalar_select %p24, 0, %s23
    %s26 = sadd.s32 1, %s17
    %s27 = scalar_select %p24, %s26, %s17
    %p28 = scmp.ge.s32.totalorder %s27, 2
    %s29 = scalar_select %p28, 0, %s27
    %s30 = ssub.s32 %s17, %s29
    %s31 = ssub.s32 %s18, %s25
    %s32 = sor.u32 %s30, %s31
    %p33 = scmp.eq.s32.totalorder %s32, 0
    %s35 = sadd.s32 %s34, 1
    %s36 = scalar_select %p33, %s34, %s35
    %p39 = pneg %p33
    %p40 = scmp.eq.s32.totalorder %s10, 7
    %p41 = por %p39, %p40
    %p42 = scmp.ne.s32.totalorder %s34, %s37
    %p43 = scmp.eq.s32.totalorder %s10, 0
    %p44 = por %p42, %p43
    %p45 = scmp.ne.s32.totalorder %s34, %s37
    %p46 = scmp.eq.s32.totalorder %s15, 7
    %p47 = por %p45, %p46
    %p48 = scmp.ne.s32.totalorder %s37, %s38
    %p49 = scmp.eq.s32.totalorder %s15, 0
    %p50 = por %p48, %p49
    %p51 = scmp.ne.s32.totalorder %s37, %s38
    %p52 = scmp.eq.s32.totalorder %s16, 7
    %p53 = por %p51, %p52
    %p55 = scmp.ne.s32.totalorder %s38, %s54
    %p56 = scmp.eq.s32.totalorder %s16, 0
    %p57 = por %p55, %p56
    %s58 = ssub.s32 %s17, %s29
    %s59 = ssub.s32 %s18, %s25
    %s60 = sor.u32 %s58, %s59
    %p61 = scmp.eq.s32.totalorder %s60, 0
    %s63 = sadd.s32 %s62, 1
    %s64 = scalar_select %p61, %s62, %s63
    %p67 = pneg %p61
    %p68 = scmp.eq.s32.totalorder %s10, 7
    %p69 = por %p67, %p68
    %p70 = scmp.ne.s32.totalorder %s62, %s65
    %p71 = scmp.eq.s32.totalorder %s10, 0
    %p72 = por %p70, %p71
    %p73 = scmp.ne.s32.totalorder %s62, %s65
    %p74 = scmp.eq.s32.totalorder %s15, 7
    %p75 = por %p73, %p74
    %p76 = scmp.ne.s32.totalorder %s65, %s66
    %p77 = scmp.eq.s32.totalorder %s15, 0
    %p78 = por %p76, %p77
    %p79 = scmp.ne.s32.totalorder %s65, %s66
    %p80 = scmp.eq.s32.totalorder %s16, 7
    %p81 = por %p79, %p80
    %p83 = scmp.ne.s32.totalorder %s66, %s82
    %p84 = scmp.eq.s32.totalorder %s16, 0
    %p85 = por %p83, %p84
    %s86 = ssub.s32 %s17, %s29
    %s87 = ssub.s32 %s18, %s25
    %s88 = sor.u32 %s86, %s87
    %p89 = scmp.eq.s32.totalorder %s88, 0
    %s91 = sadd.s32 %s90, 1
    %s92 = scalar_select %p89, %s90, %s91
    %p95 = pneg %p89
    %p96 = scmp.eq.s32.totalorder %s10, 7
    %p97 = por %p95, %p96
    %p98 = scmp.ne.s32.totalorder %s90, %s93
    %p99 = scmp.eq.s32.totalorder %s10, 0
    %p100 = por %p98, %p99
    %p101 = scmp.ne.s32.totalorder %s90, %s93
    %p102 = scmp.eq.s32.totalorder %s15, 7
    %p103 = por %p101, %p102
    %p104 = scmp.ne.s32.totalorder %s93, %s94
    %p105 = scmp.eq.s32.totalorder %s15, 0
    %p106 = por %p104, %p105
    %p107 = scmp.ne.s32.totalorder %s93, %s94
    %p108 = scmp.eq.s32.totalorder %s16, 7
    %p109 = por %p107, %p108
    %p111 = scmp.ne.s32.totalorder %s94, %s110
    %p112 = scmp.eq.s32.totalorder %s16, 0
    %p113 = por %p111, %p112
    %s114 = ssub.s32 %s17, %s29
    %p115 = scmp.eq.s32.totalorder %s114, 0
    %s117 = sadd.s32 %s116, 1
    %s118 = scalar_select %p115, %s116, %s117
    %p121 = pneg %p115
    %p122 = scmp.eq.s32.totalorder %s10, 7
    %p123 = por %p121, %p122
    %p124 = scmp.ne.s32.totalorder %s116, %s119
    %p125 = scmp.eq.s32.totalorder %s10, 0
    %p126 = por %p124, %p125
    %p127 = scmp.ne.s32.totalorder %s116, %s119
    %p128 = scmp.eq.s32.totalorder %s15, 7
    %p129 = por %p127, %p128
    %p130 = scmp.ne.s32.totalorder %s119, %s120
    %p131 = scmp.eq.s32.totalorder %s15, 0
    %p132 = por %p130, %p131
    %p133 = scmp.ne.s32.totalorder %s119, %s120
    %p134 = scmp.eq.s32.totalorder %s16, 7
    %p135 = por %p133, %p134
    %p137 = scmp.ne.s32.totalorder %s120, %s136
    %p138 = scmp.eq.s32.totalorder %s16, 0
    %p139 = por %p137, %p138
    %s140 = ssub.s32 %s17, %s29
    %s141 = ssub.s32 %s18, %s25
    %s142 = sor.u32 %s140, %s141
    %p143 = scmp.eq.s32.totalorder %s142, 0
    %s145 = sadd.s32 %s144, 1
    %s146 = scalar_select %p143, %s144, %s145
    %p149 = pneg %p143
    %p150 = scmp.eq.s32.totalorder %s10, 7
    %p151 = por %p149, %p150
    %p152 = scmp.ne.s32.totalorder %s144, %s147
    %p153 = scmp.eq.s32.totalorder %s10, 0
    %p154 = por %p152, %p153
    %p155 = scmp.ne.s32.totalorder %s144, %s147
    %p156 = scmp.eq.s32.totalorder %s15, 7
    %p157 = por %p155, %p156
    %p158 = scmp.ne.s32.totalorder %s147, %s148
    %p159 = scmp.eq.s32.totalorder %s15, 0
    %p160 = por %p158, %p159
    %p161 = scmp.ne.s32.totalorder %s147, %s148
    %p162 = scmp.eq.s32.totalorder %s16, 7
    %p163 = por %p161, %p162
    %p165 = scmp.ne.s32.totalorder %s148, %s164
    %p166 = scmp.eq.s32.totalorder %s16, 0
    %p167 = por %p165, %p166
    %p168 = scmp.le.s32.totalorder 1, %s10
    %p169 = scmp.lt.s32.totalorder %s10, 9
    %p170 = pnand %p168, %p169
    %p171 = pneg %p170
    // Predicated region
    $region9: #{seq2seq_transformer_forward.42} parent=5 // pred_check
      _
    $region10: #{seq2seq_transformer_forward.42} parent=5 // pred_check_branch
      %173 = sbr.rel (%p170) target = $region12
    $region11: #{seq2seq_transformer_forward.42} parent=5 // pred_region
      %s174 = ssub.s32 %s10, 1
    $region12: #{seq2seq_transformer_forward.42} parent=5 // pred_fallthru
      _
    %p175 = scmp.lt.s32.totalorder %s10, 8
    // Predicated region
    $region13: #{seq2seq_transformer_forward.42} parent=5 // pred_check
      %p176 = pneg %p175
    $region14: #{seq2seq_transformer_forward.42} parent=5 // pred_check_branch
      %178 = sbr.rel (%p176) target = $region16
    $region15: #{seq2seq_transformer_forward.42} parent=5 // pred_region
      // Predicated region
      $region17: #{seq2seq_transformer_forward.42} parent=15 // pred_check
        %p179 = pneg %p44
      $region18: #{seq2seq_transformer_forward.42} parent=15 // pred_check_branch
        %181 = sbr.rel (%p179) target = $region20
      $region19: #{seq2seq_transformer_forward.42} parent=15 // pred_region
        %p182 = scmp.lt.s32.totalorder %s17, 1
        %s183 = scalar_select %p182, %s17, 1
        %p184 = scmp.lt.s32.totalorder %s18, 3
        %s185 = scalar_select %p184, %s18, 3
        %s186 = smul.addr %s183, 4
        %s187 = sadd.s32 %s185, %s186
        %s188 = smul.addr %s187, 4
        %s189 = scalar_lea.vmem %s0, %s188
      $region20: #{seq2seq_transformer_forward.42} parent=15 // pred_fallthru
        _
      // Predicated region
      $region21: #{seq2seq_transformer_forward.42} parent=15 // pred_check
        %p190 = pneg %p72
      $region22: #{seq2seq_transformer_forward.42} parent=15 // pred_check_branch
        %192 = sbr.rel (%p190) target = $region24
      $region23: #{seq2seq_transformer_forward.42} parent=15 // pred_region
        %p193 = scmp.lt.s32.totalorder %s17, 1
        %s194 = scalar_select %p193, %s17, 1
        %p195 = scmp.lt.s32.totalorder %s18, 3
        %s196 = scalar_select %p195, %s18, 3
        %s197 = smul.addr %s194, 4
        %s198 = sadd.s32 %s196, %s197
        %s199 = smul.addr %s198, 4
        %s200 = scalar_lea.vmem %s1, %s199
      $region24: #{seq2seq_transformer_forward.42} parent=15 // pred_fallthru
        _
      // Predicated region
      $region25: #{seq2seq_transformer_forward.42} parent=15 // pred_check
        %p201 = pneg %p100
      $region26: #{seq2seq_transformer_forward.42} parent=15 // pred_check_branch
        %203 = sbr.rel (%p201) target = $region28
      $region27: #{seq2seq_transformer_forward.42} parent=15 // pred_region
        %p204 = scmp.lt.s32.totalorder %s17, 1
        %s205 = scalar_select %p204, %s17, 1
        %p206 = scmp.lt.s32.totalorder %s18, 3
        %s207 = scalar_select %p206, %s18, 3
        %s208 = smul.addr %s205, 4
        %s209 = sadd.s32 %s207, %s208
        %s210 = smul.addr %s209, 4
        %s211 = scalar_lea.vmem %s2, %s210
      $region28: #{seq2seq_transformer_forward.42} parent=15 // pred_fallthru
        _
      // Predicated region
      $region29: #{seq2seq_transformer_forward.42} parent=15 // pred_check
        %p212 = pneg %p126
      $region30: #{seq2seq_transformer_forward.42} parent=15 // pred_check_branch
        %214 = sbr.rel (%p212) target = $region32
      $region31: #{seq2seq_transformer_forward.42} parent=15 // pred_region
        %p215 = scmp.lt.s32.totalorder %s17, 1
        %s216 = scalar_select %p215, %s17, 1
        %s217 = scalar_lea.vmem %s3, %s216
      $region32: #{seq2seq_transformer_forward.42} parent=15 // pred_fallthru
        _
    $region16: #{seq2seq_transformer_forward.42} parent=5 // pred_fallthru
      _
    %p218 = scmp.le.s32.totalorder 1, %s10
    %p219 = scmp.lt.s32.totalorder %s10, 9
    %p220 = pnand %p218, %p219
    %p221 = pneg %p220
    // Predicated region
    $region33: #{seq2seq_transformer_forward.42} parent=5 // pred_check
      _
    $region34: #{seq2seq_transformer_forward.42} parent=5 // pred_check_branch
      %223 = sbr.rel (%p220) target = $region36
    $region35: #{seq2seq_transformer_forward.42} parent=5 // pred_region
      %s224 = ssub.s32 %s10, 1
      %p225 = scmp.lt.s32.totalorder %s19, 1
      %s226 = scalar_select %p225, %s19, 1
      %p227 = scmp.lt.s32.totalorder %s20, 3
      %s228 = scalar_select %p227, %s20, 3
      %s229 = smul.addr %s226, 4
      %s230 = sadd.s32 %s228, %s229
      %s231 = smul.addr %s230, 4
      %s232 = scalar_lea.vmem %s0, %s231
      %p233 = pneg %p50
      %p234 = pneg %p47
      %p235 = scmp.lt.s32.totalorder %s19, 1
      %s236 = scalar_select %p235, %s19, 1
      %p237 = scmp.lt.s32.totalorder %s20, 3
      %s238 = scalar_select %p237, %s20, 3
      %s239 = smul.addr %s236, 4
      %s240 = sadd.s32 %s238, %s239
      %s241 = smul.addr %s240, 4
      %s242 = scalar_lea.vmem %s1, %s241
      %p243 = pneg %p78
      %p244 = pneg %p75
      %p245 = scmp.lt.s32.totalorder %s19, 1
      %s246 = scalar_select %p245, %s19, 1
      %p247 = scmp.lt.s32.totalorder %s20, 3
      %s248 = scalar_select %p247, %s20, 3
      %s249 = smul.addr %s246, 4
      %s250 = sadd.s32 %s248, %s249
      %s251 = smul.addr %s250, 4
      %s252 = scalar_lea.vmem %s2, %s251
      %p253 = pneg %p106
      %p254 = pneg %p103
      %p255 = scmp.lt.s32.totalorder %s19, 1
      %s256 = scalar_select %p255, %s19, 1
      %s257 = scalar_lea.vmem %s3, %s256
      %p258 = pneg %p132
      %p259 = pneg %p129
      %p260 = pneg %p160
      %p261 = pneg %p157
      %p262 = scmp.lt.s32.totalorder %s19, 1
      %s263 = scalar_select %p262, %s19, 1
      %p264 = scmp.lt.s32.totalorder %s20, 3
      %s265 = scalar_select %p264, %s20, 3
      %s266 = smul.addr %s263, 4
      %s267 = sadd.s32 %s265, %s266
      %s268 = smul.addr %s267, 4
      %s269 = scalar_lea.vmem %s4, %s268
      %p270 = scmp.lt.s32.totalorder %s19, 1
      %s271 = scalar_select %p270, %s19, 1
      %p272 = scmp.lt.s32.totalorder %s20, 3
      %s273 = scalar_select %p272, %s20, 3
      %s274 = smul.addr %s271, 4
      %s275 = sadd.s32 %s273, %s274
      %s276 = smul.addr %s275, 4
      %s277 = scalar_lea.vmem %s0, %s276
      %p278 = scmp.lt.s32.totalorder %s19, 1
      %s279 = scalar_select %p278, %s19, 1
      %p280 = scmp.lt.s32.totalorder %s20, 3
      %s281 = scalar_select %p280, %s20, 3
      %s282 = smul.addr %s279, 4
      %s283 = sadd.s32 %s281, %s282
      %s284 = smul.addr %s283, 4
      %s285 = scalar_lea.vmem %s1, %s284
      %p286 = scmp.lt.s32.totalorder %s19, 1
      %s287 = scalar_select %p286, %s19, 1
      %p288 = scmp.lt.s32.totalorder %s20, 3
      %s289 = scalar_select %p288, %s20, 3
      %s290 = smul.addr %s287, 4
      %s291 = sadd.s32 %s289, %s290
      %s292 = smul.addr %s291, 4
      %s293 = scalar_lea.vmem %s2, %s292
      %p294 = scmp.lt.s32.totalorder %s19, 1
      %s295 = scalar_select %p294, %s19, 1
      %s296 = scalar_lea.vmem %s3, %s295
      %p297 = scmp.lt.s32.totalorder %s19, 1
      %s298 = scalar_select %p297, %s19, 1
      %p299 = scmp.lt.s32.totalorder %s20, 3
      %s300 = scalar_select %p299, %s20, 3
      %s301 = smul.addr %s298, 4
      %s302 = sadd.s32 %s300, %s301
      %s303 = smul.addr %s302, 4
      %s304 = scalar_lea.vmem %s4, %s303
      %v307 = vld [vmem:[%s277] sm:$0xf]
      %v308 = vmul.bf16 %v307, 1052065461
      %v309 = vld [vmem:[%s285] sm:$0xf]
      %v310 = vld [vmem:[%s293] sm:$0xf]
      %v311 = vld [vmem:[%s296] sm:$0x1]
      %v313 = vlaneseq
      %v314 = vshrl.u32 %v313, 7
      %v315 = vsub.s32 0, %v314
      %v316 = vrot.slane %v311, %v315
      %vm318 = vcmask 64512
      %v320 = vsel %vm318, %v308, 0
      %v323 = vsel %vm318, %v309, 0
      %325 = vmatprep.subr.bf16.mxu0 0
      %326 = vmatpush1.bf16.xpose.msra.mxu0 %v323
      %327 = vmatprep.subr.bf16.mxu0 0
      %328 = vmatpush1.bf16.xpose.msra.mxu0 0
      %329 = vmatprep.subr.bf16.mxu0 0
      %330 = vmatpush1.bf16.xpose.msra.mxu0 0
      %331 = vmatprep.subr.bf16.mxu0 0
      %332 = vmatpush1.bf16.xpose.msra.mxu0 0
      %333 = vmatprep.subr.bf16.mxu0 0
      %334 = vmatpush1.bf16.xpose.msra.mxu0 0
      %335 = vmatprep.subr.bf16.mxu0 0
      %336 = vmatpush1.bf16.xpose.msra.mxu0 0
      %337 = vmatprep.subr.bf16.mxu0 0
      %338 = vmatpush1.bf16.xpose.msra.mxu0 0
      %339 = vmatprep.subr.bf16.mxu0 0
      %340 = vmatpush1.bf16.xpose.msra.mxu0 0
      %341 = vmatprep.subr.bf16.mxu0 0
      %342 = vmatpush1.bf16.xpose.msra.mxu0 0
      %343 = vmatprep.subr.bf16.mxu0 0
      %344 = vmatpush1.bf16.xpose.msra.mxu0 0
      %345 = vmatprep.subr.bf16.mxu0 0
      %346 = vmatpush1.bf16.xpose.msra.mxu0 0
      %347 = vmatprep.subr.bf16.mxu0 0
      %348 = vmatpush1.bf16.xpose.msra.mxu0 0
      %349 = vmatprep.subr.bf16.mxu0 0
      %350 = vmatpush1.bf16.xpose.msra.mxu0 0
      %351 = vmatprep.subr.bf16.mxu0 0
      %352 = vmatpush1.bf16.xpose.msra.mxu0 0
      %353 = vmatprep.subr.bf16.mxu0 0
      %354 = vmatpush1.bf16.xpose.msra.mxu0 0
      %355 = vmatprep.subr.bf16.mxu0 0
      %356 = vmatpush1.bf16.xpose.msra.mxu0 0
      %357 = vmatprep.mubr.bf16.mxu0 0
      %358 = vmatmul.mubr.bf16.gmra.mrb[0].mxu0 %v320
      %v359 = vpop.f32.mrb[0].mxu0
      %v360 = vadd.f32 %v316, %v359
      %v361 = vpop.f32.mrb[0].mxu0
      %v362 = vpop.f32.mrb[0].mxu0
      %v363 = vpop.f32.mrb[0].mxu0
      %364 = vdwg.mxu0
      %v365 = vsel %vm318, %v360, -inf
      %366 = vmax.xlane.f32.xlu0 %v365
      %v367 = vpop.xlane.xlu0 %366
      %v368 = vsub.f32 %v360, %v367
      %v369 = vmul.f32 %v368, 1.442695
      %v370 = vpow.pop %v369
      %v371 = vsel %vm318, %v370, 0.0
      %372 = vadd.xlane.f32.xlu0 %v371
      %v373 = vpop.xlane.xlu0 %372
      %v374 = vrcp.pop %v373
      %v375 = vmul.f32 %v370, %v374
      %v376 = vpack.c.bf16 %v375, %v375
      %v378 = vsel %vm318, %v376, 0
      %vm380 = vcmask 1043456
      %v382 = vsel %vm380, %v310, 0
      %384 = vmatprep.subr.bf16.mxu0 0
      %385 = vmatpush1.bf16.msra.mxu0 %v382
      %386 = vmatprep.subr.bf16.mxu0 0
      %387 = vmatpush1.bf16.msra.mxu0 0
      %388 = vmatprep.subr.bf16.mxu0 0
      %389 = vmatpush1.bf16.msra.mxu0 0
      %390 = vmatprep.subr.bf16.mxu0 0
      %391 = vmatpush1.bf16.msra.mxu0 0
      %392 = vmatprep.subr.bf16.mxu0 0
      %393 = vmatpush1.bf16.msra.mxu0 0
      %394 = vmatprep.subr.bf16.mxu0 0
      %395 = vmatpush1.bf16.msra.mxu0 0
      %396 = vmatprep.subr.bf16.mxu0 0
      %397 = vmatpush1.bf16.msra.mxu0 0
      %398 = vmatprep.subr.bf16.mxu0 0
      %399 = vmatpush1.bf16.msra.mxu0 0
      %400 = vmatprep.subr.bf16.mxu0 0
      %401 = vmatpush1.bf16.msra.mxu0 0
      %402 = vmatprep.subr.bf16.mxu0 0
      %403 = vmatpush1.bf16.msra.mxu0 0
      %404 = vmatprep.subr.bf16.mxu0 0
      %405 = vmatpush1.bf16.msra.mxu0 0
      %406 = vmatprep.subr.bf16.mxu0 0
      %407 = vmatpush1.bf16.msra.mxu0 0
      %408 = vmatprep.subr.bf16.mxu0 0
      %409 = vmatpush1.bf16.msra.mxu0 0
      %410 = vmatprep.subr.bf16.mxu0 0
      %411 = vmatpush1.bf16.msra.mxu0 0
      %412 = vmatprep.subr.bf16.mxu0 0
      %413 = vmatpush1.bf16.msra.mxu0 0
      %414 = vmatprep.subr.bf16.mxu0 0
      %415 = vmatpush1.bf16.msra.mxu0 0
      %416 = vmatprep.mubr.bf16.mxu0 0
      %417 = vmatmul.mubr.bf16.gmra.mrb[0].mxu0 %v378
      %v418 = vpop.f32.mrb[0].mxu0
      %v419 = vadd.f32 0.0, %v418
      %v420 = vpop.f32.mrb[0].mxu0
      %v421 = vpop.f32.mrb[0].mxu0
      %v422 = vpop.f32.mrb[0].mxu0
      %423 = vdwg.mxu0
      %v424 = vpack.c.bf16 %v419, %v419
      %vm425 = vcmask 60416
      %426 = vst.msk [vmem:[%s304] sm:$0xf] %vm425, %v424
      %p427 = scmp.lt.s32.totalorder %s19, 1
      %s428 = scalar_select %p427, %s19, 1
      %p429 = scmp.lt.s32.totalorder %s20, 3
      %s430 = scalar_select %p429, %s20, 3
      %s431 = smul.addr %s428, 4
      %s432 = sadd.s32 %s430, %s431
      %s433 = smul.addr %s432, 4
      %s434 = scalar_lea.vmem %s4, %s433
      // Predicated region
      $region37: #{seq2seq_transformer_forward.42} parent=35 // pred_check
        %p435 = pneg %p157
      $region38: #{seq2seq_transformer_forward.42} parent=35 // pred_check_branch
        %437 = sbr.rel (%p435) target = $region40
      $region39: #{seq2seq_transformer_forward.42} parent=35 // pred_region
        _
      $region40: #{seq2seq_transformer_forward.42} parent=35 // pred_fallthru
        _
    $region36: #{seq2seq_transformer_forward.42} parent=5 // pred_fallthru
      _
    %p438 = scmp.le.s32.totalorder 2, %s10
    // Predicated region
    $region41: #{seq2seq_transformer_forward.42} parent=5 // pred_check
      %p439 = pneg %p438
    $region42: #{seq2seq_transformer_forward.42} parent=5 // pred_check_branch
      %441 = sbr.rel (%p439) target = $region44
    $region43: #{seq2seq_transformer_forward.42} parent=5 // pred_region
      %s442 = ssub.s32 %s10, 2
      // Predicated region
      $region45: #{seq2seq_transformer_forward.42} parent=43 // pred_check
        %p443 = pneg %p163
      $region46: #{seq2seq_transformer_forward.42} parent=43 // pred_check_branch
        %445 = sbr.rel (%p443) target = $region48
      $region47: #{seq2seq_transformer_forward.42} parent=43 // pred_region
        %p446 = scmp.lt.s32.totalorder %s21, 1
        %s447 = scalar_select %p446, %s21, 1
        %p448 = scmp.lt.s32.totalorder %s22, 3
        %s449 = scalar_select %p448, %s22, 3
        %s450 = smul.addr %s447, 4
        %s451 = sadd.s32 %s449, %s450
        %s452 = smul.addr %s451, 4
        %s453 = scalar_lea.vmem %s4, %s452
      $region48: #{seq2seq_transformer_forward.42} parent=43 // pred_fallthru
        _
    $region44: #{seq2seq_transformer_forward.42} parent=5 // pred_fallthru
      _
  $region6: #{seq2seq_transformer_forward.42} parent=0 // loop_footer
    %s14 = sadd.s32 1, %s10
  $region7: #{seq2seq_transformer_forward.42} parent=0 // loop_footer_branch
    %9 = sbr.rel target = $region3
  $region8: #{seq2seq_transformer_forward.42} parent=0 // loop_exit
    _

// kernel: seq2seq_transformer_forward.55
$region0: #{seq2seq_transformer_forward.55}
  #allocation0 [shape = 'u32[]', space=smem, size = 0x4, offset = 0x4, fixed_abs, tag = 'smem constant byte address 0x4 - core index']
  #allocation1 [shape = 'u32[144,128]{1,0:T(1,128)}', space=vmem, size = 0x12000, scoped, tag = 'internal scratch']
  %s0 = inlined_call_operand.vmem [shape: f32[16,32], index: 0, kind: input, shape index: {}]
  %s1 = inlined_call_operand.vmem [shape: f32[1,32], index: 1, kind: input, shape index: {}]
  %s2 = inlined_call_operand.vmem [shape: f32[1,32], index: 2, kind: input, shape index: {}]
  %s3 = inlined_call_operand.vmem [shape: f32[16,32], index: 3, kind: output, shape index: {}]
  %s4 = sld [smem:[#allocation0]]
  $region22: #{seq2seq_transformer_forward.55} parent=0
    _
  %s6 = ssub.s32 1, %s4
  %s7 = scalar_select 0, %s6, %s4
  // Predicated region
  $region2: #{seq2seq_transformer_forward.55} parent=0 // pred_check
    _
  $region3: #{seq2seq_transformer_forward.55} parent=0 // pred_check_branch
    %9 = sbr.rel (0) target = $region5
  $region4: #{seq2seq_transformer_forward.55} parent=0 // pred_region
    _
  $region5: #{seq2seq_transformer_forward.55} parent=0 // pred_fallthru
    _
  // Predicated region
  $region6: #{seq2seq_transformer_forward.55} parent=0 // pred_check
    _
  $region7: #{seq2seq_transformer_forward.55} parent=0 // pred_check_branch
    %11 = sbr.rel (0) target = $region9
  $region8: #{seq2seq_transformer_forward.55} parent=0 // pred_region
    _
  $region9: #{seq2seq_transformer_forward.55} parent=0 // pred_fallthru
    _
  // Predicated region
  $region10: #{seq2seq_transformer_forward.55} parent=0 // pred_check
    _
  $region11: #{seq2seq_transformer_forward.55} parent=0 // pred_check_branch
    %13 = sbr.rel (0) target = $region13
  $region12: #{seq2seq_transformer_forward.55} parent=0 // pred_region
    _
  $region13: #{seq2seq_transformer_forward.55} parent=0 // pred_fallthru
    _
  %v14 = vld [vmem:[%s0] sm:$0xff]
  %v15 = vld [vmem:[%s0 + $0x8] sm:$0xff]
  %vm16 = vcmask 261120
  %v17 = vsel %vm16, %v14, 0.0
  %18 = vadd.xlane.f32.xlu0 %v17
  %v19 = vpop.xlane.xlu0 %18
  %v20 = vsel %vm16, %v15, 0.0
  %21 = vadd.xlane.f32.xlu0 %v20
  %v22 = vpop.xlane.xlu0 %21
  %v23 = vrcp.pop 32.0
  %v24 = vmul.f32 %v19, %v23
  %v25 = vmul.f32 %v22, %v23
  %v26 = vsub.f32 %v14, %v24
  %v27 = vsub.f32 %v15, %v25
  %v28 = vmul.f32 %v26, %v26
  %v29 = vmul.f32 %v27, %v27
  %v30 = vsel %vm16, %v28, 0.0
  %31 = vadd.xlane.f32.xlu0 %v30
  %v32 = vpop.xlane.xlu0 %31
  %v33 = vsel %vm16, %v29, 0.0
  %34 = vadd.xlane.f32.xlu0 %v33
  %v35 = vpop.xlane.xlu0 %34
  %v36 = vmul.f32 %v32, %v23
  %v37 = vmul.f32 %v35, %v23
  %v38 = vadd.f32 %v36, 1e-05
  %v39 = vadd.f32 %v37, 1e-05
  %v40 = vrsqrt.pop %v38
  %v41 = vrsqrt.pop %v39
  %v42 = vmul.f32 %v26, %v40
  %v43 = vmul.f32 %v27, %v41
  %v44 = vld [vmem:[%s1] sm:$0x1]
  %v46 = vlaneseq
  %v47 = vshrl.u32 %v46, 7
  %v48 = vsub.s32 0, %v47
  %v49 = vrot.slane %v44, %v48
  %v51 = vmul.f32 %v42, %v49
  %v52 = vmul.f32 %v43, %v49
  %v53 = vld [vmem:[%s2] sm:$0x1]
  %v55 = vlaneseq
  %v56 = vshrl.u32 %v55, 7
  %v57 = vsub.s32 0, %v56
  %v58 = vrot.slane %v53, %v57
  %v60 = vadd.f32 %v51, %v58
  %v61 = vadd.f32 %v52, %v58
  %62 = vst.msk [vmem:[%s3] sm:$0xff] %vm16, %v60
  %63 = vst.msk [vmem:[%s3 + $0x8] sm:$0xff] %vm16, %v61
  // Predicated region
  $region14: #{seq2seq_transformer_forward.55} parent=0 // pred_check
    _
  $region15: #{seq2seq_transformer_forward.55} parent=0 // pred_check_branch
    %65 = sbr.rel (0) target = $region17
  $region16: #{seq2seq_transformer_forward.55} parent=0 // pred_region
    _
  $region17: #{seq2seq_transformer_forward.55} parent=0 // pred_fallthru
    _
  // Predicated region
  $region18: #{seq2seq_transformer_forward.55} parent=0 // pred_check
    _
  $region19: #{seq2seq_transformer_forward.55} parent=0 // pred_check_branch
    %67 = sbr.rel (0) target = $region21
  $region20: #{seq2seq_transformer_forward.55} parent=0 // pred_region
    _
  $region21: #{seq2seq_transformer_forward.55} parent=0 // pred_fallthru
    _

// kernel: seq2seq_transformer_forward.45
$region0: #{seq2seq_transformer_forward.45}
  #allocation0 [shape = 'u32[]', space=smem, size = 0x4, offset = 0x4, fixed_abs, tag = 'smem constant byte address 0x4 - core index']
  #allocation1 [shape = 'u32[144,128]{1,0:T(1,128)}', space=vmem, size = 0x12000, scoped, tag = 'internal scratch']
  #allocation2 [shape = 'f32[16,128]{1,0:T(8,128)}', space=vmem, size = 0x2000, scoped, tag = 'scratch operand']
  %s0 = inlined_call_operand.vmem [shape: bf16[16,128], index: 0, kind: input, shape index: {}]
  %s1 = inlined_call_operand.vmem [shape: bf16[128,128], index: 1, kind: input, shape index: {}]
  %s2 = inlined_call_operand.vmem [shape: f32[1,128], index: 2, kind: input, shape index: {}]
  %s3 = inlined_call_operand.vmem [shape: bf16[16,128], index: 3, kind: output, shape index: {}]
  %s4 = sld [smem:[#allocation0]]
  $region30: #{seq2seq_transformer_forward.45} parent=0
    _
  %s6 = ssub.s32 1, %s4
  %s7 = scalar_select 0, %s6, %s4
  // Predicated region
  $region2: #{seq2seq_transformer_forward.45} parent=0 // pred_check
    _
  $region3: #{seq2seq_transformer_forward.45} parent=0 // pred_check_branch
    %9 = sbr.rel (0) target = $region5
  $region4: #{seq2seq_transformer_forward.45} parent=0 // pred_region
    _
  $region5: #{seq2seq_transformer_forward.45} parent=0 // pred_fallthru
    _
  // Predicated region
  $region6: #{seq2seq_transformer_forward.45} parent=0 // pred_check
    _
  $region7: #{seq2seq_transformer_forward.45} parent=0 // pred_check_branch
    %11 = sbr.rel (0) target = $region9
  $region8: #{seq2seq_transformer_forward.45} parent=0 // pred_region
    _
  $region9: #{seq2seq_transformer_forward.45} parent=0 // pred_fallthru
    _
  // Predicated region
  $region10: #{seq2seq_transformer_forward.45} parent=0 // pred_check
    _
  $region11: #{seq2seq_transformer_forward.45} parent=0 // pred_check_branch
    %13 = sbr.rel (0) target = $region13
  $region12: #{seq2seq_transformer_forward.45} parent=0 // pred_region
    _
  $region13: #{seq2seq_transformer_forward.45} parent=0 // pred_fallthru
    _
  %p15 = scmp.eq.s32.totalorder 0, 0
  // Predicated region
  $region14: #{seq2seq_transformer_forward.45} parent=0 // pred_check
    %p16 = pneg %p15
  $region15: #{seq2seq_transformer_forward.45} parent=0 // pred_check_branch
    %18 = sbr.rel (%p16) target = $region17
  $region16: #{seq2seq_transformer_forward.45} parent=0 // pred_region
    %19 = vst [vmem:[#allocation2] sm:$0xff] 0.0
    %20 = vst [vmem:[#allocation2 + $0x8] sm:$0xff] 0.0
  $region17: #{seq2seq_transformer_forward.45} parent=0 // pred_fallthru
    _
  %v21 = vld [vmem:[#allocation2] sm:$0xff]
  %v22 = vld [vmem:[#allocation2 + $0x8] sm:$0xff]
  %v23 = vld [vmem:[%s0] sm:$0xf]
  %v24 = vld [vmem:[%s0 + $0x4] sm:$0xf]
  %v25 = vld [vmem:[%s1] sm:$0xf]
  %v26 = vld [vmem:[%s1 + $0x4] sm:$0xf]
  %v27 = vld [vmem:[%s1 + $0x8] sm:$0xf]
  %v28 = vld [vmem:[%s1 + $0xc] sm:$0xf]
  %v29 = vld [vmem:[%s1 + $0x10] sm:$0xf]
  %v30 = vld [vmem:[%s1 + $0x14] sm:$0xf]
  %v31 = vld [vmem:[%s1 + $0x18] sm:$0xf]
  %v32 = vld [vmem:[%s1 + $0x1c] sm:$0xf]
  %v33 = vld [vmem:[%s1 + $0x20] sm:$0xf]
  %v34 = vld [vmem:[%s1 + $0x24] sm:$0xf]
  %v35 = vld [vmem:[%s1 + $0x28] sm:$0xf]
  %v36 = vld [vmem:[%s1 + $0x2c] sm:$0xf]
  %v37 = vld [vmem:[%s1 + $0x30] sm:$0xf]
  %v38 = vld [vmem:[%s1 + $0x34] sm:$0xf]
  %v39 = vld [vmem:[%s1 + $0x38] sm:$0xf]
  %v40 = vld [vmem:[%s1 + $0x3c] sm:$0xf]
  %v43 = vunpack.c.l.b16 %v23
  %v44 = vunpack.c.l.b16 %v24
  %v45 = vpack.c.b16 %v44, %v43
  %v63 = vunpack.c.l.b16 %v25
  %v64 = vunpack.c.l.b16 %v26
  %v65 = vunpack.c.l.b16 %v27
  %v66 = vunpack.c.l.b16 %v28
  %v67 = vunpack.c.l.b16 %v29
  %v68 = vunpack.c.l.b16 %v30
  %v69 = vunpack.c.l.b16 %v31
  %v70 = vunpack.c.l.b16 %v32
  %v71 = vunpack.c.l.b16 %v33
  %v72 = vunpack.c.l.b16 %v34
  %v73 = vunpack.c.l.b16 %v35
  %v74 = vunpack.c.l.b16 %v36
  %v75 = vunpack.c.l.b16 %v37
  %v76 = vunpack.c.l.b16 %v38
  %v77 = vunpack.c.l.b16 %v39
  %v78 = vunpack.c.l.b16 %v40
  %v79 = vpack.c.b16 %v64, %v63
  %v80 = vpack.c.b16 %v66, %v65
  %v81 = vpack.c.b16 %v68, %v67
  %v82 = vpack.c.b16 %v70, %v69
  %v83 = vpack.c.b16 %v72, %v71
  %v84 = vpack.c.b16 %v74, %v73
  %v85 = vpack.c.b16 %v76, %v75
  %v86 = vpack.c.b16 %v78, %v77
  %95 = vmatprep.subr.bf16.mxu0 0
  %96 = vmatpush1.bf16.msra.mxu0 %v79
  %97 = vmatprep.subr.bf16.mxu0 0
  %98 = vmatpush1.bf16.msra.mxu0 %v80
  %99 = vmatprep.subr.bf16.mxu0 0
  %100 = vmatpush1.bf16.msra.mxu0 %v81
  %101 = vmatprep.subr.bf16.mxu0 0
  %102 = vmatpush1.bf16.msra.mxu0 %v82
  %103 = vmatprep.subr.bf16.mxu0 0
  %104 = vmatpush1.bf16.msra.mxu0 %v83
  %105 = vmatprep.subr.bf16.mxu0 0
  %106 = vmatpush1.bf16.msra.mxu0 %v84
  %107 = vmatprep.subr.bf16.mxu0 0
  %108 = vmatpush1.bf16.msra.mxu0 %v85
  %109 = vmatprep.subr.bf16.mxu0 0
  %110 = vmatpush1.bf16.msra.mxu0 %v86
  %111 = vmatprep.subr.bf16.mxu0 0
  %112 = vmatpush1.bf16.msra.mxu0 0
  %113 = vmatprep.subr.bf16.mxu0 0
  %114 = vmatpush1.bf16.msra.mxu0 0
  %115 = vmatprep.subr.bf16.mxu0 0
  %116 = vmatpush1.bf16.msra.mxu0 0
  %117 = vmatprep.subr.bf16.mxu0 0
  %118 = vmatpush1.bf16.msra.mxu0 0
  %119 = vmatprep.subr.bf16.mxu0 0
  %120 = vmatpush1.bf16.msra.mxu0 0
  %121 = vmatprep.subr.bf16.mxu0 0
  %122 = vmatpush1.bf16.msra.mxu0 0
  %123 = vmatprep.subr.bf16.mxu0 0
  %124 = vmatpush1.bf16.msra.mxu0 0
  %125 = vmatprep.subr.bf16.mxu0 0
  %126 = vmatpush1.bf16.msra.mxu0 0
  %127 = vmatprep.mubr.bf16.mxu0 0
  %128 = vmatmul.mubr.bf16.gmra.mrb[0].mxu0 %v45
  %v129 = vpop.f32.mrb[0].mxu0
  %v130 = vadd.f32 0.0, %v129
  %v131 = vpop.f32.mrb[0].mxu0
  %v132 = vpop.f32.mrb[0].mxu0
  %v133 = vadd.f32 0.0, %v132
  %v134 = vpop.f32.mrb[0].mxu0
  %135 = vdwg.mxu0
  %v136 = vadd.f32 %v21, %v130
  %v137 = vadd.f32 %v22, %v133
  %138 = vst [vmem:[#allocation2] sm:$0xff] %v136
  %139 = vst [vmem:[#allocation2 + $0x8] sm:$0xff] %v137
  // Predicated region
  $region18: #{seq2seq_transformer_forward.45} parent=0 // pred_check
    %p140 = pneg %p15
  $region19: #{seq2seq_transformer_forward.45} parent=0 // pred_check_branch
    %142 = sbr.rel (%p140) target = $region21
  $region20: #{seq2seq_transformer_forward.45} parent=0 // pred_region
    %v143 = vld [vmem:[#allocation2] sm:$0xff]
    %v144 = vld [vmem:[#allocation2 + $0x8] sm:$0xff]
    %v145 = vld [vmem:[%s2] sm:$0x1]
    %v147 = vlaneseq
    %v148 = vshrl.u32 %v147, 7
    %v149 = vsub.s32 0, %v148
    %v150 = vrot.slane %v145, %v149
    %v152 = vadd.f32 %v143, %v150
    %v153 = vadd.f32 %v144, %v150
    %v154 = vmax.f32 %v152, 0.0
    %v155 = vmax.f32 %v153, 0.0
    %v156 = vpack.c.bf16 %v155, %v154
    %v158 = vunpack.c.l.b16 %v156
    %v159 = vunpack.c.h.b16 %v156
    %v160 = vpack.c.b16 %v158, %v158
    %v161 = vpack.c.b16 %v159, %v159
    %164 = vst [vmem:[%s3] sm:$0xf] %v160
    %165 = vst [vmem:[%s3 + $0x4] sm:$0xf] %v161
  $region21: #{seq2seq_transformer_forward.45} parent=0 // pred_fallthru
    _
  // Predicated region
  $region22: #{seq2seq_transformer_forward.45} parent=0 // pred_check
    _
  $region23: #{seq2seq_transformer_forward.45} parent=0 // pred_check_branch
    %167 = sbr.rel (0) target = $region25
  $region24: #{seq2seq_transformer_forward.45} parent=0 // pred_region
    _
  $region25: #{seq2seq_transformer_forward.45} parent=0 // pred_fallthru
    _
  // Predicated region
  $region26: #{seq2seq_transformer_forward.45} parent=0 // pred_check
    _
  $region27: #{seq2seq_transformer_forward.45} parent=0 // pred_check_branch
    %169 = sbr.rel (0) target = $region29
  $region28: #{seq2seq_transformer_forward.45} parent=0 // pred_region
    _
  $region29: #{seq2seq_transformer_forward.45} parent=0 // pred_fallthru
    _

// kernel: seq2seq_transformer_forward.62
$region0: #{seq2seq_transformer_forward.62}
  #allocation0 [shape = 'u32[]', space=smem, size = 0x4, offset = 0x4, fixed_abs, tag = 'smem constant byte address 0x4 - core index']
  #allocation1 [shape = 'u32[144,128]{1,0:T(1,128)}', space=vmem, size = 0x12000, scoped, tag = 'internal scratch']
  %s0 = inlined_call_operand.vmem [shape: bf16[2,4,8,8], index: 0, kind: input, shape index: {}]
  %s1 = inlined_call_operand.vmem [shape: bf16[2,4,8,8], index: 1, kind: input, shape index: {}]
  %s2 = inlined_call_operand.vmem [shape: bf16[2,4,8,8], index: 2, kind: input, shape index: {}]
  %s3 = inlined_call_operand.vmem [shape: bf16[2,4,8,8], index: 3, kind: output, shape index: {}]
  %s4 = sld [smem:[#allocation0]]
  $region45: #{seq2seq_transformer_forward.62} parent=0
    _
  %s6 = ssub.s32 1, %s4
  %s7 = scalar_select 0, %s6, %s4
  loop: start=0, step=1, limit=10
  $region2: #{seq2seq_transformer_forward.62} parent=0 // loop_pre_header
    _
  $region3: #{seq2seq_transformer_forward.62} parent=0 // loop_header
    %s9 = sphi 0, %s13
    %p10 = scmp.ge.s32.totalorder %s9, 10
    %s16 = sphi 0, %s28
    %s17 = sphi 0, %s24
    %s18 = sphi 0, %s16
    %s19 = sphi 0, %s17
    %s20 = sphi 0, %s18
    %s21 = sphi 0, %s19
    %s33 = sphi 0, %s35
    %s36 = sphi 0, %s33
    %s37 = sphi 0, %s36
    %s53 = sphi 0, %s37
    %s61 = sphi 0, %s63
    %s64 = sphi 0, %s61
    %s65 = sphi 0, %s64
    %s81 = sphi 0, %s65
    %s89 = sphi 0, %s91
    %s92 = sphi 0, %s89
    %s93 = sphi 0, %s92
    %s109 = sphi 0, %s93
    %s117 = sphi 0, %s119
    %s120 = sphi 0, %s117
    %s121 = sphi 0, %s120
    %s137 = sphi 0, %s121
  $region4: #{seq2seq_transformer_forward.62} parent=0 // loop_header_branch
    %12 = sbr.rel (%p10) target = $region8
  $region5: #{seq2seq_transformer_forward.62} parent=0 // loop_body
    %s14 = ssub.s32 %s9, 1
    %s15 = ssub.s32 %s9, 2
    %s22 = sadd.s32 1, %s17
    %p23 = scmp.ge.s32.totalorder %s22, 4
    %s24 = scalar_select %p23, 0, %s22
    %s25 = sadd.s32 1, %s16
    %s26 = scalar_select %p23, %s25, %s16
    %p27 = scmp.ge.s32.totalorder %s26, 2
    %s28 = scalar_select %p27, 0, %s26
    %s29 = ssub.s32 %s16, %s28
    %s30 = ssub.s32 %s17, %s24
    %s31 = sor.u32 %s29, %s30
    %p32 = scmp.eq.s32.totalorder %s31, 0
    %s34 = sadd.s32 %s33, 1
    %s35 = scalar_select %p32, %s33, %s34
    %p38 = pneg %p32
    %p39 = scmp.eq.s32.totalorder %s9, 7
    %p40 = por %p38, %p39
    %p41 = scmp.ne.s32.totalorder %s33, %s36
    %p42 = scmp.eq.s32.totalorder %s9, 0
    %p43 = por %p41, %p42
    %p44 = scmp.ne.s32.totalorder %s33, %s36
    %p45 = scmp.eq.s32.totalorder %s14, 7
    %p46 = por %p44, %p45
    %p47 = scmp.ne.s32.totalorder %s36, %s37
    %p48 = scmp.eq.s32.totalorder %s14, 0
    %p49 = por %p47, %p48
    %p50 = scmp.ne.s32.totalorder %s36, %s37
    %p51 = scmp.eq.s32.totalorder %s15, 7
    %p52 = por %p50, %p51
    %p54 = scmp.ne.s32.totalorder %s37, %s53
    %p55 = scmp.eq.s32.totalorder %s15, 0
    %p56 = por %p54, %p55
    %s57 = ssub.s32 %s16, %s28
    %s58 = ssub.s32 %s17, %s24
    %s59 = sor.u32 %s57, %s58
    %p60 = scmp.eq.s32.totalorder %s59, 0
    %s62 = sadd.s32 %s61, 1
    %s63 = scalar_select %p60, %s61, %s62
    %p66 = pneg %p60
    %p67 = scmp.eq.s32.totalorder %s9, 7
    %p68 = por %p66, %p67
    %p69 = scmp.ne.s32.totalorder %s61, %s64
    %p70 = scmp.eq.s32.totalorder %s9, 0
    %p71 = por %p69, %p70
    %p72 = scmp.ne.s32.totalorder %s61, %s64
    %p73 = scmp.eq.s32.totalorder %s14, 7
    %p74 = por %p72, %p73
    %p75 = scmp.ne.s32.totalorder %s64, %s65
    %p76 = scmp.eq.s32.totalorder %s14, 0
    %p77 = por %p75, %p76
    %p78 = scmp.ne.s32.totalorder %s64, %s65
    %p79 = scmp.eq.s32.totalorder %s15, 7
    %p80 = por %p78, %p79
    %p82 = scmp.ne.s32.totalorder %s65, %s81
    %p83 = scmp.eq.s32.totalorder %s15, 0
    %p84 = por %p82, %p83
    %s85 = ssub.s32 %s16, %s28
    %s86 = ssub.s32 %s17, %s24
    %s87 = sor.u32 %s85, %s86
    %p88 = scmp.eq.s32.totalorder %s87, 0
    %s90 = sadd.s32 %s89, 1
    %s91 = scalar_select %p88, %s89, %s90
    %p94 = pneg %p88
    %p95 = scmp.eq.s32.totalorder %s9, 7
    %p96 = por %p94, %p95
    %p97 = scmp.ne.s32.totalorder %s89, %s92
    %p98 = scmp.eq.s32.totalorder %s9, 0
    %p99 = por %p97, %p98
    %p100 = scmp.ne.s32.totalorder %s89, %s92
    %p101 = scmp.eq.s32.totalorder %s14, 7
    %p102 = por %p100, %p101
    %p103 = scmp.ne.s32.totalorder %s92, %s93
    %p104 = scmp.eq.s32.totalorder %s14, 0
    %p105 = por %p103, %p104
    %p106 = scmp.ne.s32.totalorder %s92, %s93
    %p107 = scmp.eq.s32.totalorder %s15, 7
    %p108 = por %p106, %p107
    %p110 = scmp.ne.s32.totalorder %s93, %s109
    %p111 = scmp.eq.s32.totalorder %s15, 0
    %p112 = por %p110, %p111
    %s113 = ssub.s32 %s16, %s28
    %s114 = ssub.s32 %s17, %s24
    %s115 = sor.u32 %s113, %s114
    %p116 = scmp.eq.s32.totalorder %s115, 0
    %s118 = sadd.s32 %s117, 1
    %s119 = scalar_select %p116, %s117, %s118
    %p122 = pneg %p116
    %p123 = scmp.eq.s32.totalorder %s9, 7
    %p124 = por %p122, %p123
    %p125 = scmp.ne.s32.totalorder %s117, %s120
    %p126 = scmp.eq.s32.totalorder %s9, 0
    %p127 = por %p125, %p126
    %p128 = scmp.ne.s32.totalorder %s117, %s120
    %p129 = scmp.eq.s32.totalorder %s14, 7
    %p130 = por %p128, %p129
    %p131 = scmp.ne.s32.totalorder %s120, %s121
    %p132 = scmp.eq.s32.totalorder %s14, 0
    %p133 = por %p131, %p132
    %p134 = scmp.ne.s32.totalorder %s120, %s121
    %p135 = scmp.eq.s32.totalorder %s15, 7
    %p136 = por %p134, %p135
    %p138 = scmp.ne.s32.totalorder %s121, %s137
    %p139 = scmp.eq.s32.totalorder %s15, 0
    %p140 = por %p138, %p139
    %p141 = scmp.le.s32.totalorder 1, %s9
    %p142 = scmp.lt.s32.totalorder %s9, 9
    %p143 = pnand %p141, %p142
    %p144 = pneg %p143
    // Predicated region
    $region9: #{seq2seq_transformer_forward.62} parent=5 // pred_check
      _
    $region10: #{seq2seq_transformer_forward.62} parent=5 // pred_check_branch
      %146 = sbr.rel (%p143) target = $region12
    $region11: #{seq2seq_transformer_forward.62} parent=5 // pred_region
      %s147 = ssub.s32 %s9, 1
    $region12: #{seq2seq_transformer_forward.62} parent=5 // pred_fallthru
      _
    %p148 = scmp.lt.s32.totalorder %s9, 8
    // Predicated region
    $region13: #{seq2seq_transformer_forward.62} parent=5 // pred_check
      %p149 = pneg %p148
    $region14: #{seq2seq_transformer_forward.62} parent=5 // pred_check_branch
      %151 = sbr.rel (%p149) target = $region16
    $region15: #{seq2seq_transformer_forward.62} parent=5 // pred_region
      // Predicated region
      $region17: #{seq2seq_transformer_forward.62} parent=15 // pred_check
        %p152 = pneg %p43
      $region18: #{seq2seq_transformer_forward.62} parent=15 // pred_check_branch
        %154 = sbr.rel (%p152) target = $region20
      $region19: #{seq2seq_transformer_forward.62} parent=15 // pred_region
        %p155 = scmp.lt.s32.totalorder %s16, 1
        %s156 = scalar_select %p155, %s16, 1
        %p157 = scmp.lt.s32.totalorder %s17, 3
        %s158 = scalar_select %p157, %s17, 3
        %s159 = smul.addr %s156, 4
        %s160 = sadd.s32 %s158, %s159
        %s161 = smul.addr %s160, 4
        %s162 = scalar_lea.vmem %s0, %s161
      $region20: #{seq2seq_transformer_forward.62} parent=15 // pred_fallthru
        _
      // Predicated region
      $region21: #{seq2seq_transformer_forward.62} parent=15 // pred_check
        %p163 = pneg %p71
      $region22: #{seq2seq_transformer_forward.62} parent=15 // pred_check_branch
        %165 = sbr.rel (%p163) target = $region24
      $region23: #{seq2seq_transformer_forward.62} parent=15 // pred_region
        %p166 = scmp.lt.s32.totalorder %s16, 1
        %s167 = scalar_select %p166, %s16, 1
        %p168 = scmp.lt.s32.totalorder %s17, 3
        %s169 = scalar_select %p168, %s17, 3
        %s170 = smul.addr %s167, 4
        %s171 = sadd.s32 %s169, %s170
        %s172 = smul.addr %s171, 4
        %s173 = scalar_lea.vmem %s1, %s172
      $region24: #{seq2seq_transformer_forward.62} parent=15 // pred_fallthru
        _
      // Predicated region
      $region25: #{seq2seq_transformer_forward.62} parent=15 // pred_check
        %p174 = pneg %p99
      $region26: #{seq2seq_transformer_forward.62} parent=15 // pred_check_branch
        %176 = sbr.rel (%p174) target = $region28
      $region27: #{seq2seq_transformer_forward.62} parent=15 // pred_region
        %p177 = scmp.lt.s32.totalorder %s16, 1
        %s178 = scalar_select %p177, %s16, 1
        %p179 = scmp.lt.s32.totalorder %s17, 3
        %s180 = scalar_select %p179, %s17, 3
        %s181 = smul.addr %s178, 4
        %s182 = sadd.s32 %s180, %s181
        %s183 = smul.addr %s182, 4
        %s184 = scalar_lea.vmem %s2, %s183
      $region28: #{seq2seq_transformer_forward.62} parent=15 // pred_fallthru
        _
    $region16: #{seq2seq_transformer_forward.62} parent=5 // pred_fallthru
      _
    %p185 = scmp.le.s32.totalorder 1, %s9
    %p186 = scmp.lt.s32.totalorder %s9, 9
    %p187 = pnand %p185, %p186
    %p188 = pneg %p187
    // Predicated region
    $region29: #{seq2seq_transformer_forward.62} parent=5 // pred_check
      _
    $region30: #{seq2seq_transformer_forward.62} parent=5 // pred_check_branch
      %190 = sbr.rel (%p187) target = $region32
    $region31: #{seq2seq_transformer_forward.62} parent=5 // pred_region
      %s191 = ssub.s32 %s9, 1
      %p192 = scmp.lt.s32.totalorder %s18, 1
      %s193 = scalar_select %p192, %s18, 1
      %p194 = scmp.lt.s32.totalorder %s19, 3
      %s195 = scalar_select %p194, %s19, 3
      %s196 = smul.addr %s193, 4
      %s197 = sadd.s32 %s195, %s196
      %s198 = smul.addr %s197, 4
      %s199 = scalar_lea.vmem %s0, %s198
      %p200 = pneg %p49
      %p201 = pneg %p46
      %p202 = scmp.lt.s32.totalorder %s18, 1
      %s203 = scalar_select %p202, %s18, 1
      %p204 = scmp.lt.s32.totalorder %s19, 3
      %s205 = scalar_select %p204, %s19, 3
      %s206 = smul.addr %s203, 4
      %s207 = sadd.s32 %s205, %s206
      %s208 = smul.addr %s207, 4
      %s209 = scalar_lea.vmem %s1, %s208
      %p210 = pneg %p77
      %p211 = pneg %p74
      %p212 = scmp.lt.s32.totalorder %s18, 1
      %s213 = scalar_select %p212, %s18, 1
      %p214 = scmp.lt.s32.totalorder %s19, 3
      %s215 = scalar_select %p214, %s19, 3
      %s216 = smul.addr %s213, 4
      %s217 = sadd.s32 %s215, %s216
      %s218 = smul.addr %s217, 4
      %s219 = scalar_lea.vmem %s2, %s218
      %p220 = pneg %p105
      %p221 = pneg %p102
      %p222 = pneg %p133
      %p223 = pneg %p130
      %p224 = scmp.lt.s32.totalorder %s18, 1
      %s225 = scalar_select %p224, %s18, 1
      %p226 = scmp.lt.s32.totalorder %s19, 3
      %s227 = scalar_select %p226, %s19, 3
      %s228 = smul.addr %s225, 4
      %s229 = sadd.s32 %s227, %s228
      %s230 = smul.addr %s229, 4
      %s231 = scalar_lea.vmem %s3, %s230
      %p232 = scmp.lt.s32.totalorder %s18, 1
      %s233 = scalar_select %p232, %s18, 1
      %p234 = scmp.lt.s32.totalorder %s19, 3
      %s235 = scalar_select %p234, %s19, 3
      %s236 = smul.addr %s233, 4
      %s237 = sadd.s32 %s235, %s236
      %s238 = smul.addr %s237, 4
      %s239 = scalar_lea.vmem %s0, %s238
      %p240 = scmp.lt.s32.totalorder %s18, 1
      %s241 = scalar_select %p240, %s18, 1
      %p242 = scmp.lt.s32.totalorder %s19, 3
      %s243 = scalar_select %p242, %s19, 3
      %s244 = smul.addr %s241, 4
      %s245 = sadd.s32 %s243, %s244
      %s246 = smul.addr %s245, 4
      %s247 = scalar_lea.vmem %s1, %s246
      %p248 = scmp.lt.s32.totalorder %s18, 1
      %s249 = scalar_select %p248, %s18, 1
      %p250 = scmp.lt.s32.totalorder %s19, 3
      %s251 = scalar_select %p250, %s19, 3
      %s252 = smul.addr %s249, 4
      %s253 = sadd.s32 %s251, %s252
      %s254 = smul.addr %s253, 4
      %s255 = scalar_lea.vmem %s2, %s254
      %p256 = scmp.lt.s32.totalorder %s18, 1
      %s257 = scalar_select %p256, %s18, 1
      %p258 = scmp.lt.s32.totalorder %s19, 3
      %s259 = scalar_select %p258, %s19, 3
      %s260 = smul.addr %s257, 4
      %s261 = sadd.s32 %s259, %s260
      %s262 = smul.addr %s261, 4
      %s263 = scalar_lea.vmem %s3, %s262
      %v266 = vld [vmem:[%s239] sm:$0xf]
      %v267 = vmul.bf16 %v266, 1052065461
      %v268 = vld [vmem:[%s247] sm:$0xf]
      %v269 = vld [vmem:[%s255] sm:$0xf]
      %vm270 = vcmask 64512
      %v272 = vsel %vm270, %v267, 0
      %v275 = vsel %vm270, %v268, 0
      %277 = vmatprep.subr.bf16.mxu0 0
      %278 = vmatpush1.bf16.xpose.msra.mxu0 %v275
      %279 = vmatprep.subr.bf16.mxu0 0
      %280 = vmatpush1.bf16.xpose.msra.mxu0 0
      %281 = vmatprep.subr.bf16.mxu0 0
      %282 = vmatpush1.bf16.xpose.msra.mxu0 0
      %283 = vmatprep.subr.bf16.mxu0 0
      %284 = vmatpush1.bf16.xpose.msra.mxu0 0
      %285 = vmatprep.subr.bf16.mxu0 0
      %286 = vmatpush1.bf16.xpose.msra.mxu0 0
      %287 = vmatprep.subr.bf16.mxu0 0
      %288 = vmatpush1.bf16.xpose.msra.mxu0 0
      %289 = vmatprep.subr.bf16.mxu0 0
      %290 = vmatpush1.bf16.xpose.msra.mxu0 0
      %291 = vmatprep.subr.bf16.mxu0 0
      %292 = vmatpush1.bf16.xpose.msra.mxu0 0
      %293 = vmatprep.subr.bf16.mxu0 0
      %294 = vmatpush1.bf16.xpose.msra.mxu0 0
      %295 = vmatprep.subr.bf16.mxu0 0
      %296 = vmatpush1.bf16.xpose.msra.mxu0 0
      %297 = vmatprep.subr.bf16.mxu0 0
      %298 = vmatpush1.bf16.xpose.msra.mxu0 0
      %299 = vmatprep.subr.bf16.mxu0 0
      %300 = vmatpush1.bf16.xpose.msra.mxu0 0
      %301 = vmatprep.subr.bf16.mxu0 0
      %302 = vmatpush1.bf16.xpose.msra.mxu0 0
      %303 = vmatprep.subr.bf16.mxu0 0
      %304 = vmatpush1.bf16.xpose.msra.mxu0 0
      %305 = vmatprep.subr.bf16.mxu0 0
      %306 = vmatpush1.bf16.xpose.msra.mxu0 0
      %307 = vmatprep.subr.bf16.mxu0 0
      %308 = vmatpush1.bf16.xpose.msra.mxu0 0
      %309 = vmatprep.mubr.bf16.mxu0 0
      %310 = vmatmul.mubr.bf16.gmra.mrb[0].mxu0 %v272
      %v311 = vpop.f32.mrb[0].mxu0
      %v312 = vadd.f32 0.0, %v311
      %v313 = vpop.f32.mrb[0].mxu0
      %v314 = vpop.f32.mrb[0].mxu0
      %v315 = vpop.f32.mrb[0].mxu0
      %316 = vdwg.mxu0
      %v317 = vsel %vm270, %v312, -inf
      %318 = vmax.xlane.f32.xlu0 %v317
      %v319 = vpop.xlane.xlu0 %318
      %v320 = vsub.f32 %v312, %v319
      %v321 = vmul.f32 %v320, 1.442695
      %v322 = vpow.pop %v321
      %v323 = vsel %vm270, %v322, 0.0
      %324 = vadd.xlane.f32.xlu0 %v323
      %v325 = vpop.xlane.xlu0 %324
      %v326 = vrcp.pop %v325
      %v327 = vmul.f32 %v322, %v326
      %v328 = vpack.c.bf16 %v327, %v327
      %v330 = vsel %vm270, %v328, 0
      %vm332 = vcmask 1043456
      %v334 = vsel %vm332, %v269, 0
      %336 = vmatprep.subr.bf16.mxu0 0
      %337 = vmatpush1.bf16.msra.mxu0 %v334
      %338 = vmatprep.subr.bf16.mxu0 0
      %339 = vmatpush1.bf16.msra.mxu0 0
      %340 = vmatprep.subr.bf16.mxu0 0
      %341 = vmatpush1.bf16.msra.mxu0 0
      %342 = vmatprep.subr.bf16.mxu0 0
      %343 = vmatpush1.bf16.msra.mxu0 0
      %344 = vmatprep.subr.bf16.mxu0 0
      %345 = vmatpush1.bf16.msra.mxu0 0
      %346 = vmatprep.subr.bf16.mxu0 0
      %347 = vmatpush1.bf16.msra.mxu0 0
      %348 = vmatprep.subr.bf16.mxu0 0
      %349 = vmatpush1.bf16.msra.mxu0 0
      %350 = vmatprep.subr.bf16.mxu0 0
      %351 = vmatpush1.bf16.msra.mxu0 0
      %352 = vmatprep.subr.bf16.mxu0 0
      %353 = vmatpush1.bf16.msra.mxu0 0
      %354 = vmatprep.subr.bf16.mxu0 0
      %355 = vmatpush1.bf16.msra.mxu0 0
      %356 = vmatprep.subr.bf16.mxu0 0
      %357 = vmatpush1.bf16.msra.mxu0 0
      %358 = vmatprep.subr.bf16.mxu0 0
      %359 = vmatpush1.bf16.msra.mxu0 0
      %360 = vmatprep.subr.bf16.mxu0 0
      %361 = vmatpush1.bf16.msra.mxu0 0
      %362 = vmatprep.subr.bf16.mxu0 0
      %363 = vmatpush1.bf16.msra.mxu0 0
      %364 = vmatprep.subr.bf16.mxu0 0
      %365 = vmatpush1.bf16.msra.mxu0 0
      %366 = vmatprep.subr.bf16.mxu0 0
      %367 = vmatpush1.bf16.msra.mxu0 0
      %368 = vmatprep.mubr.bf16.mxu0 0
      %369 = vmatmul.mubr.bf16.gmra.mrb[0].mxu0 %v330
      %v370 = vpop.f32.mrb[0].mxu0
      %v371 = vadd.f32 0.0, %v370
      %v372 = vpop.f32.mrb[0].mxu0
      %v373 = vpop.f32.mrb[0].mxu0
      %v374 = vpop.f32.mrb[0].mxu0
      %375 = vdwg.mxu0
      %v376 = vpack.c.bf16 %v371, %v371
      %vm377 = vcmask 60416
      %378 = vst.msk [vmem:[%s263] sm:$0xf] %vm377, %v376
      %p379 = scmp.lt.s32.totalorder %s18, 1
      %s380 = scalar_select %p379, %s18, 1
      %p381 = scmp.lt.s32.totalorder %s19, 3
      %s382 = scalar_select %p381, %s19, 3
      %s383 = smul.addr %s380, 4
      %s384 = sadd.s32 %s382, %s383
      %s385 = smul.addr %s384, 4
      %s386 = scalar_lea.vmem %s3, %s385
      // Predicated region
      $region33: #{seq2seq_transformer_forward.62} parent=31 // pred_check
        %p387 = pneg %p130
      $region34: #{seq2seq_transformer_forward.62} parent=31 // pred_check_branch
        %389 = sbr.rel (%p387) target = $region36
      $region35: #{seq2seq_transformer_forward.62} parent=31 // pred_region
        _
      $region36: #{seq2seq_transformer_forward.62} parent=31 // pred_fallthru
        _
    $region32: #{seq2seq_transformer_forward.62} parent=5 // pred_fallthru
      _
    %p390 = scmp.le.s32.totalorder 2, %s9
    // Predicated region
    $region37: #{seq2seq_transformer_forward.62} parent=5 // pred_check
      %p391 = pneg %p390
    $region38: #{seq2seq_transformer_forward.62} parent=5 // pred_check_branch
      %393 = sbr.rel (%p391) target = $region40
    $region39: #{seq2seq_transformer_forward.62} parent=5 // pred_region
      %s394 = ssub.s32 %s9, 2
      // Predicated region
      $region41: #{seq2seq_transformer_forward.62} parent=39 // pred_check
        %p395 = pneg %p136
      $region42: #{seq2seq_transformer_forward.62} parent=39 // pred_check_branch
        %397 = sbr.rel (%p395) target = $region44
      $region43: #{seq2seq_transformer_forward.62} parent=39 // pred_region
        %p398 = scmp.lt.s32.totalorder %s20, 1
        %s399 = scalar_select %p398, %s20, 1
        %p400 = scmp.lt.s32.totalorder %s21, 3
        %s401 = scalar_select %p400, %s21, 3
        %s402 = smul.addr %s399, 4
        %s403 = sadd.s32 %s401, %s402
        %s404 = smul.addr %s403, 4
        %s405 = scalar_lea.vmem %s3, %s404
      $region44: #{seq2seq_transformer_forward.62} parent=39 // pred_fallthru
        _
    $region40: #{seq2seq_transformer_forward.62} parent=5 // pred_fallthru
      _
  $region6: #{seq2seq_transformer_forward.62} parent=0 // loop_footer
    %s13 = sadd.s32 1, %s9
  $region7: #{seq2seq_transformer_forward.62} parent=0 // loop_footer_branch
    %8 = sbr.rel target = $region3
  $region8: #{seq2seq_transformer_forward.62} parent=0 // loop_exit
    _

</llo_original>
